<compile_context>
chip_gen: v6e
topology: v6e:2x2x1
jax: 0.10.0
libtpu: 0.0.40
codegen_flags: <defaults>
</compile_context>

<pallas_src>
import functools

import jax
import jax.numpy as jnp
from jax.experimental import pallas as pl
from jax.experimental.pallas import tpu as pltpu

NEG_SLOPE = 0.01  # PyTorch nn.LeakyReLU default


def _leaky_relu(x):
    # one mul + one max on the VPU (cheaper than compare+select+mul)
    return jnp.maximum(x, NEG_SLOPE * x)


def mlp_kernel(x_ref, w1_ref, b1_ref, w2_ref, b2_ref, w3_ref, b3_ref, o_ref):
    # Whole forward fused on-chip: three MXU matmuls (f32 accumulation) with
    # bias + LeakyReLU epilogues on the VPU.
    cdt = w1_ref.dtype  # compute dtype (f32 or bf16); biases stay f32

    h = jnp.dot(x_ref[...], w1_ref[...], preferred_element_type=jnp.float32)
    h = _leaky_relu(h + b1_ref[...]).astype(cdt)

    h = jnp.dot(h, w2_ref[...], preferred_element_type=jnp.float32)
    h = _leaky_relu(h + b2_ref[...]).astype(cdt)

    h = jnp.dot(h, w3_ref[...], preferred_element_type=jnp.float32)
    o_ref[...] = _leaky_relu(h + b3_ref[...]).astype(o_ref.dtype)


def _round_up(n, m):
    return ((n + m - 1) // m) * m


@functools.partial(jax.jit, static_argnames=("block_b", "compute_dtype"))
def mlp_forward(x, w1, b1, w2, b2, w3, b3, *, block_b=256,
                compute_dtype=jnp.float32):
    """y = LeakyReLU(LeakyReLU(LeakyReLU(x@W1+b1)@W2+b2)@W3+b3).

    x: (B, 784); Wi stored as (in_features, out_features); bi as (1, out).
    """
    B, D_in = x.shape
    H1 = w1.shape[1]
    H2 = w2.shape[1]
    D_out = w3.shape[1]

    # Lane-dense padding of feature dims (multiples of 128) and batch padding
    # so the grid divides evenly.  Zero padding is exact: padded hidden columns
    # see bias 0 -> LeakyReLU(0) = 0, and padded W rows multiply those zeros.
    H1p = _round_up(H1, 128)    # 200 -> 256
    H2p = _round_up(H2, 128)    # 200 -> 256
    Dop = _round_up(D_out, 128)  # 10 -> 128
    Bp = _round_up(B, block_b)

    xp = jnp.pad(x, ((0, Bp - B), (0, 0))).astype(compute_dtype)
    w1p = jnp.pad(w1, ((0, 0), (0, H1p - H1))).astype(compute_dtype)
    b1p = jnp.pad(b1, ((0, 0), (0, H1p - H1))).astype(jnp.float32)
    w2p = jnp.pad(w2, ((0, H1p - H1), (0, H2p - H2))).astype(compute_dtype)
    b2p = jnp.pad(b2, ((0, 0), (0, H2p - H2))).astype(jnp.float32)
    w3p = jnp.pad(w3, ((0, H2p - H2), (0, Dop - D_out))).astype(compute_dtype)
    b3p = jnp.pad(b3, ((0, 0), (0, Dop - D_out))).astype(jnp.float32)

    grid = (Bp // block_b,)

    in_specs = [
        pl.BlockSpec((block_b, D_in), lambda i: (i, 0)),   # x tile (per step)
        pl.BlockSpec((D_in, H1p), lambda i: (0, 0)),       # W1 (resident)
        pl.BlockSpec((1, H1p), lambda i: (0, 0)),          # b1
        pl.BlockSpec((H1p, H2p), lambda i: (0, 0)),        # W2
        pl.BlockSpec((1, H2p), lambda i: (0, 0)),          # b2
        pl.BlockSpec((H2p, Dop), lambda i: (0, 0)),        # W3
        pl.BlockSpec((1, Dop), lambda i: (0, 0)),          # b3
    ]
    out_spec = pl.BlockSpec((block_b, Dop), lambda i: (i, 0))

    out_padded = pl.pallas_call(
        mlp_kernel,
        out_shape=jax.ShapeDtypeStruct((Bp, Dop), jnp.float32),
        grid_spec=pltpu.PrefetchScalarGridSpec(
            num_scalar_prefetch=0,
            grid=grid,
            in_specs=in_specs,
            out_specs=out_spec,
        ),
        compiler_params=pltpu.CompilerParams(
            dimension_semantics=("parallel",),  # shard batch tiles across TCs (v7x)
        ),
    )(xp, w1p, b1p, w2p, b2p, w3p, b3p)

    # Drop the padded rows / output columns.
    return out_padded[:B, :D_out]


def init_linear_params(key, fan_in, fan_out):
    # Mimics PyTorch nn.Linear default init: U(-1/sqrt(fan_in), 1/sqrt(fan_in)).
    kw, kb = jax.random.split(key)
    bound = 1.0 / jnp.sqrt(fan_in)
    w = jax.random.uniform(kw, (fan_in, fan_out), jnp.float32, -bound, bound)
    b = jax.random.uniform(kb, (1, fan_out), jnp.float32, -bound, bound)
    return w, b


def mlp_reference(x, w1, b1, w2, b2, w3, b3):
    h = jax.nn.leaky_relu(x @ w1 + b1, NEG_SLOPE)
    h = jax.nn.leaky_relu(h @ w2 + b2, NEG_SLOPE)
    return jax.nn.leaky_relu(h @ w3 + b3, NEG_SLOPE)


if __name__ == "__main__":
    key = jax.random.PRNGKey(0)
    kx, k1, k2, k3 = jax.random.split(key, 4)

    B = 8  # small test batch; wrapper pads it up to one block
    x = jax.random.normal(kx, (B, 784), jnp.float32)

    w1, b1 = init_linear_params(k1, 784, 200)
    w2, b2 = init_linear_params(k2, 200, 200)
    w3, b3 = init_linear_params(k3, 200, 10)

    ref = mlp_reference(x, w1, b1, w2, b2, w3, b3)

    # f32 path (tight tolerance).
    out_f32 = jax.block_until_ready(
        mlp_forward(x, w1, b1, w2, b2, w3, b3,
                    block_b=128, compute_dtype=jnp.float32))
    assert out_f32.shape == (B, 10)
    assert jnp.allclose(out_f32, ref, atol=1e-4, rtol=1e-4), "f32 mismatch vs reference"

    # bf16 operand path (v6e/v7x fast path), f32 accumulation -> loose tolerance.
    out_bf16 = jax.block_until_ready(
        mlp_forward(x, w1, b1, w2, b2, w3, b3,
                    block_b=128, compute_dtype=jnp.bfloat16))
    assert out_bf16.shape == (B, 10)
    assert jnp.allclose(out_bf16, ref, atol=5e-2, rtol=5e-2), "bf16 mismatch vs reference"

    print("KERNEL_OK")
</pallas_src>

<mosaic_0001>
module attributes {stable_mosaic.version = 11 : i64} {
  func.func @mlp_kernel(%arg0: i32, %arg1: memref<128x784xf32, #tpu.memory_space<vmem>>, %arg2: memref<784x256xf32, #tpu.memory_space<vmem>>, %arg3: memref<1x256xf32, #tpu.memory_space<vmem>>, %arg4: memref<256x256xf32, #tpu.memory_space<vmem>>, %arg5: memref<1x256xf32, #tpu.memory_space<vmem>>, %arg6: memref<256x128xf32, #tpu.memory_space<vmem>>, %arg7: memref<1x128xf32, #tpu.memory_space<vmem>>, %arg8: memref<128x128xf32, #tpu.memory_space<vmem>>) attributes {dimension_semantics = [#tpu.dimension_semantics<parallel>], iteration_bounds = array<i64: 1>, scalar_prefetch = 0 : i64, scratch_operands = 0 : i64, tpu.core_type = #tpu.core_type<tc>, window_params = [{transform_indices = @transform_0, window_bounds = array<i64: 128, 784>}, {pipeline_mode = #tpu.pipeline_mode<synchronous>, transform_indices = @transform_1, window_bounds = array<i64: 784, 256>}, {pipeline_mode = #tpu.pipeline_mode<synchronous>, transform_indices = @transform_2, window_bounds = array<i64: 1, 256>}, {pipeline_mode = #tpu.pipeline_mode<synchronous>, transform_indices = @transform_3, window_bounds = array<i64: 256, 256>}, {pipeline_mode = #tpu.pipeline_mode<synchronous>, transform_indices = @transform_4, window_bounds = array<i64: 1, 256>}, {pipeline_mode = #tpu.pipeline_mode<synchronous>, transform_indices = @transform_5, window_bounds = array<i64: 256, 128>}, {pipeline_mode = #tpu.pipeline_mode<synchronous>, transform_indices = @transform_6, window_bounds = array<i64: 1, 128>}, {transform_indices = @transform_7, window_bounds = array<i64: 128, 128>}]} {
    %c0 = arith.constant 0 : index
    %c0_0 = arith.constant 0 : index
    %0 = vector.load %arg1[%c0, %c0_0] : memref<128x784xf32, #tpu.memory_space<vmem>>, vector<128x784xf32>
    %c0_1 = arith.constant 0 : index
    %c0_2 = arith.constant 0 : index
    %1 = vector.load %arg2[%c0_1, %c0_2] : memref<784x256xf32, #tpu.memory_space<vmem>>, vector<784x256xf32>
    %cst = arith.constant dense<0.000000e+00> : vector<128x256xf32>
    %2 = tpu.matmul %0, %1, %cst {dimension_numbers = #tpu.dot_dimension_numbers<[1], [0], [0], [1], [0, 0, 1, 1], [], []>} : vector<128x784xf32>, vector<784x256xf32>, vector<128x256xf32> -> vector<128x256xf32>
    %c0_3 = arith.constant 0 : index
    %c0_4 = arith.constant 0 : index
    %3 = vector.load %arg3[%c0_3, %c0_4] : memref<1x256xf32, #tpu.memory_space<vmem>>, vector<1x256xf32>
    %4 = vector.broadcast %3 : vector<1x256xf32> to vector<128x256xf32>
    %5 = arith.addf %2, %4 : vector<128x256xf32>
    %cst_5 = arith.constant 0.00999999977 : f32
    %6 = vector.broadcast %cst_5 : f32 to vector<128x256xf32>
    %7 = arith.mulf %6, %5 : vector<128x256xf32>
    %8 = arith.maximumf %5, %7 : vector<128x256xf32>
    %c0_6 = arith.constant 0 : index
    %c0_7 = arith.constant 0 : index
    %9 = vector.load %arg4[%c0_6, %c0_7] : memref<256x256xf32, #tpu.memory_space<vmem>>, vector<256x256xf32>
    %cst_8 = arith.constant dense<0.000000e+00> : vector<128x256xf32>
    %10 = tpu.matmul %8, %9, %cst_8 {dimension_numbers = #tpu.dot_dimension_numbers<[1], [0], [0], [1], [0, 0, 1, 1], [], []>} : vector<128x256xf32>, vector<256x256xf32>, vector<128x256xf32> -> vector<128x256xf32>
    %c0_9 = arith.constant 0 : index
    %c0_10 = arith.constant 0 : index
    %11 = vector.load %arg5[%c0_9, %c0_10] : memref<1x256xf32, #tpu.memory_space<vmem>>, vector<1x256xf32>
    %12 = vector.broadcast %11 : vector<1x256xf32> to vector<128x256xf32>
    %13 = arith.addf %10, %12 : vector<128x256xf32>
    %cst_11 = arith.constant 0.00999999977 : f32
    %14 = vector.broadcast %cst_11 : f32 to vector<128x256xf32>
    %15 = arith.mulf %14, %13 : vector<128x256xf32>
    %16 = arith.maximumf %13, %15 : vector<128x256xf32>
    %c0_12 = arith.constant 0 : index
    %c0_13 = arith.constant 0 : index
    %17 = vector.load %arg6[%c0_12, %c0_13] : memref<256x128xf32, #tpu.memory_space<vmem>>, vector<256x128xf32>
    %cst_14 = arith.constant dense<0.000000e+00> : vector<128x128xf32>
    %18 = tpu.matmul %16, %17, %cst_14 {dimension_numbers = #tpu.dot_dimension_numbers<[1], [0], [0], [1], [0, 0, 1, 1], [], []>} : vector<128x256xf32>, vector<256x128xf32>, vector<128x128xf32> -> vector<128x128xf32>
    %c0_15 = arith.constant 0 : index
    %c0_16 = arith.constant 0 : index
    %19 = vector.load %arg7[%c0_15, %c0_16] : memref<1x128xf32, #tpu.memory_space<vmem>>, vector<1x128xf32>
    %20 = vector.broadcast %19 : vector<1x128xf32> to vector<128x128xf32>
    %21 = arith.addf %18, %20 : vector<128x128xf32>
    %cst_17 = arith.constant 0.00999999977 : f32
    %22 = vector.broadcast %cst_17 : f32 to vector<128x128xf32>
    %23 = arith.mulf %22, %21 : vector<128x128xf32>
    %24 = arith.maximumf %21, %23 : vector<128x128xf32>
    %c0_18 = arith.constant 0 : index
    %c0_19 = arith.constant 0 : index
    %25 = vector.load %arg8[%c0_18, %c0_19] : memref<128x128xf32, #tpu.memory_space<vmem>>, vector<128x128xf32>
    tpu.vector_store %arg8[%c0_18, %c0_19], %24 {strides = array<i32>} : memref<128x128xf32, #tpu.memory_space<vmem>>, vector<128x128xf32>,
    return
  }
  func.func @transform_0(%arg0: i32) -> (i32, i32) {
    %c0_i32 = arith.constant 0 : i32
    %c0_i32_0 = arith.constant 0 : i32
    return %arg0, %c0_i32 : i32, i32
  }
  func.func @transform_1(%arg0: i32) -> (i32, i32) {
    %c0_i32 = arith.constant 0 : i32
    %c0_i32_0 = arith.constant 0 : i32
    %c0_i32_1 = arith.constant 0 : i32
    return %c0_i32, %c0_i32_0 : i32, i32
  }
  func.func @transform_2(%arg0: i32) -> (i32, i32) {
    %c0_i32 = arith.constant 0 : i32
    %c0_i32_0 = arith.constant 0 : i32
    %c0_i32_1 = arith.constant 0 : i32
    return %c0_i32, %c0_i32_0 : i32, i32
  }
  func.func @transform_3(%arg0: i32) -> (i32, i32) {
    %c0_i32 = arith.constant 0 : i32
    %c0_i32_0 = arith.constant 0 : i32
    %c0_i32_1 = arith.constant 0 : i32
    return %c0_i32, %c0_i32_0 : i32, i32
  }
  func.func @transform_4(%arg0: i32) -> (i32, i32) {
    %c0_i32 = arith.constant 0 : i32
    %c0_i32_0 = arith.constant 0 : i32
    %c0_i32_1 = arith.constant 0 : i32
    return %c0_i32, %c0_i32_0 : i32, i32
  }
  func.func @transform_5(%arg0: i32) -> (i32, i32) {
    %c0_i32 = arith.constant 0 : i32
    %c0_i32_0 = arith.constant 0 : i32
    %c0_i32_1 = arith.constant 0 : i32
    return %c0_i32, %c0_i32_0 : i32, i32
  }
  func.func @transform_6(%arg0: i32) -> (i32, i32) {
    %c0_i32 = arith.constant 0 : i32
    %c0_i32_0 = arith.constant 0 : i32
    %c0_i32_1 = arith.constant 0 : i32
    return %c0_i32, %c0_i32_0 : i32, i32
  }
  func.func @transform_7(%arg0: i32) -> (i32, i32) {
    %c0_i32 = arith.constant 0 : i32
    %c0_i32_0 = arith.constant 0 : i32
    return %arg0, %c0_i32 : i32, i32
  }
}

</mosaic_0001>

<llo_original>
// kernel: mlp_forward.1
$region0: #{mlp_forward.1}
  #allocation0 [shape = 'u32[]', space=smem, size = 0x4, offset = 0x4, fixed_abs, tag = 'smem constant byte address 0x4 - core index']
  #allocation1 [shape = 'u32[144,128]{1,0:T(1,128)}', space=vmem, size = 0x12000, scoped, tag = 'internal scratch']
  %s0 = inlined_call_operand.vmem [shape: f32[128,784], index: 0, kind: input, shape index: {}]
  %s1 = inlined_call_operand.vmem [shape: f32[784,256], index: 1, kind: input, shape index: {}]
  %s2 = inlined_call_operand.vmem [shape: f32[1,256], index: 2, kind: input, shape index: {}]
  %s3 = inlined_call_operand.vmem [shape: f32[256,256], index: 3, kind: input, shape index: {}]
  %s4 = inlined_call_operand.vmem [shape: f32[1,256], index: 4, kind: input, shape index: {}]
  %s5 = inlined_call_operand.vmem [shape: f32[256,128], index: 5, kind: input, shape index: {}]
  %s6 = inlined_call_operand.vmem [shape: f32[1,128], index: 6, kind: input, shape index: {}]
  %s7 = inlined_call_operand.vmem [shape: f32[128,128], index: 7, kind: output, shape index: {}]
  %s8 = sld [smem:[#allocation0]]
  $region38: #{mlp_forward.1} parent=0
    _
  %s10 = ssub.s32 1, %s8
  %s11 = scalar_select 0, %s10, %s8
  // Predicated region
  $region2: #{mlp_forward.1} parent=0 // pred_check
    _
  $region3: #{mlp_forward.1} parent=0 // pred_check_branch
    %13 = sbr.rel (0) target = $region5
  $region4: #{mlp_forward.1} parent=0 // pred_region
    _
  $region5: #{mlp_forward.1} parent=0 // pred_fallthru
    _
  // Predicated region
  $region6: #{mlp_forward.1} parent=0 // pred_check
    _
  $region7: #{mlp_forward.1} parent=0 // pred_check_branch
    %15 = sbr.rel (0) target = $region9
  $region8: #{mlp_forward.1} parent=0 // pred_region
    _
  $region9: #{mlp_forward.1} parent=0 // pred_fallthru
    _
  // Predicated region
  $region10: #{mlp_forward.1} parent=0 // pred_check
    _
  $region11: #{mlp_forward.1} parent=0 // pred_check_branch
    %17 = sbr.rel (0) target = $region13
  $region12: #{mlp_forward.1} parent=0 // pred_region
    _
  $region13: #{mlp_forward.1} parent=0 // pred_fallthru
    _
  // Predicated region
  $region14: #{mlp_forward.1} parent=0 // pred_check
    _
  $region15: #{mlp_forward.1} parent=0 // pred_check_branch
    %19 = sbr.rel (0) target = $region17
  $region16: #{mlp_forward.1} parent=0 // pred_region
    _
  $region17: #{mlp_forward.1} parent=0 // pred_fallthru
    _
  // Predicated region
  $region18: #{mlp_forward.1} parent=0 // pred_check
    _
  $region19: #{mlp_forward.1} parent=0 // pred_check_branch
    %21 = sbr.rel (0) target = $region21
  $region20: #{mlp_forward.1} parent=0 // pred_region
    _
  $region21: #{mlp_forward.1} parent=0 // pred_fallthru
    _
  // Predicated region
  $region22: #{mlp_forward.1} parent=0 // pred_check
    _
  $region23: #{mlp_forward.1} parent=0 // pred_check_branch
    %23 = sbr.rel (0) target = $region25
  $region24: #{mlp_forward.1} parent=0 // pred_region
    _
  $region25: #{mlp_forward.1} parent=0 // pred_fallthru
    _
  // Predicated region
  $region26: #{mlp_forward.1} parent=0 // pred_check
    _
  $region27: #{mlp_forward.1} parent=0 // pred_check_branch
    %25 = sbr.rel (0) target = $region29
  $region28: #{mlp_forward.1} parent=0 // pred_region
    _
  $region29: #{mlp_forward.1} parent=0 // pred_fallthru
    _
  %v26 = vld [vmem:[%s0] sm:$0xff]
  %v27 = vld [vmem:[%s0 + $0x8] sm:$0xff]
  %v28 = vld [vmem:[%s0 + $0x10] sm:$0xff]
  %v29 = vld [vmem:[%s0 + $0x18] sm:$0xff]
  %v30 = vld [vmem:[%s0 + $0x20] sm:$0xff]
  %v31 = vld [vmem:[%s0 + $0x28] sm:$0xff]
  %v32 = vld [vmem:[%s0 + $0x30] sm:$0xff]
  %v33 = vld [vmem:[%s0 + $0x38] sm:$0xff]
  %v34 = vld [vmem:[%s0 + $0x40] sm:$0xff]
  %v35 = vld [vmem:[%s0 + $0x48] sm:$0xff]
  %v36 = vld [vmem:[%s0 + $0x50] sm:$0xff]
  %v37 = vld [vmem:[%s0 + $0x58] sm:$0xff]
  %v38 = vld [vmem:[%s0 + $0x60] sm:$0xff]
  %v39 = vld [vmem:[%s0 + $0x68] sm:$0xff]
  %v40 = vld [vmem:[%s0 + $0x70] sm:$0xff]
  %v41 = vld [vmem:[%s0 + $0x78] sm:$0xff]
  %v42 = vld [vmem:[%s0 + $0x80] sm:$0xff]
  %v43 = vld [vmem:[%s0 + $0x88] sm:$0xff]
  %v44 = vld [vmem:[%s0 + $0x90] sm:$0xff]
  %v45 = vld [vmem:[%s0 + $0x98] sm:$0xff]
  %v46 = vld [vmem:[%s0 + $0xa0] sm:$0xff]
  %v47 = vld [vmem:[%s0 + $0xa8] sm:$0xff]
  %v48 = vld [vmem:[%s0 + $0xb0] sm:$0xff]
  %v49 = vld [vmem:[%s0 + $0xb8] sm:$0xff]
  %v50 = vld [vmem:[%s0 + $0xc0] sm:$0xff]
  %v51 = vld [vmem:[%s0 + $0xc8] sm:$0xff]
  %v52 = vld [vmem:[%s0 + $0xd0] sm:$0xff]
  %v53 = vld [vmem:[%s0 + $0xd8] sm:$0xff]
  %v54 = vld [vmem:[%s0 + $0xe0] sm:$0xff]
  %v55 = vld [vmem:[%s0 + $0xe8] sm:$0xff]
  %v56 = vld [vmem:[%s0 + $0xf0] sm:$0xff]
  %v57 = vld [vmem:[%s0 + $0xf8] sm:$0xff]
  %v58 = vld [vmem:[%s0 + $0x100] sm:$0xff]
  %v59 = vld [vmem:[%s0 + $0x108] sm:$0xff]
  %v60 = vld [vmem:[%s0 + $0x110] sm:$0xff]
  %v61 = vld [vmem:[%s0 + $0x118] sm:$0xff]
  %v62 = vld [vmem:[%s0 + $0x120] sm:$0xff]
  %v63 = vld [vmem:[%s0 + $0x128] sm:$0xff]
  %v64 = vld [vmem:[%s0 + $0x130] sm:$0xff]
  %v65 = vld [vmem:[%s0 + $0x138] sm:$0xff]
  %v66 = vld [vmem:[%s0 + $0x140] sm:$0xff]
  %v67 = vld [vmem:[%s0 + $0x148] sm:$0xff]
  %v68 = vld [vmem:[%s0 + $0x150] sm:$0xff]
  %v69 = vld [vmem:[%s0 + $0x158] sm:$0xff]
  %v70 = vld [vmem:[%s0 + $0x160] sm:$0xff]
  %v71 = vld [vmem:[%s0 + $0x168] sm:$0xff]
  %v72 = vld [vmem:[%s0 + $0x170] sm:$0xff]
  %v73 = vld [vmem:[%s0 + $0x178] sm:$0xff]
  %v74 = vld [vmem:[%s0 + $0x180] sm:$0xff]
  %v75 = vld [vmem:[%s0 + $0x188] sm:$0xff]
  %v76 = vld [vmem:[%s0 + $0x190] sm:$0xff]
  %v77 = vld [vmem:[%s0 + $0x198] sm:$0xff]
  %v78 = vld [vmem:[%s0 + $0x1a0] sm:$0xff]
  %v79 = vld [vmem:[%s0 + $0x1a8] sm:$0xff]
  %v80 = vld [vmem:[%s0 + $0x1b0] sm:$0xff]
  %v81 = vld [vmem:[%s0 + $0x1b8] sm:$0xff]
  %v82 = vld [vmem:[%s0 + $0x1c0] sm:$0xff]
  %v83 = vld [vmem:[%s0 + $0x1c8] sm:$0xff]
  %v84 = vld [vmem:[%s0 + $0x1d0] sm:$0xff]
  %v85 = vld [vmem:[%s0 + $0x1d8] sm:$0xff]
  %v86 = vld [vmem:[%s0 + $0x1e0] sm:$0xff]
  %v87 = vld [vmem:[%s0 + $0x1e8] sm:$0xff]
  %v88 = vld [vmem:[%s0 + $0x1f0] sm:$0xff]
  %v89 = vld [vmem:[%s0 + $0x1f8] sm:$0xff]
  %v90 = vld [vmem:[%s0 + $0x200] sm:$0xff]
  %v91 = vld [vmem:[%s0 + $0x208] sm:$0xff]
  %v92 = vld [vmem:[%s0 + $0x210] sm:$0xff]
  %v93 = vld [vmem:[%s0 + $0x218] sm:$0xff]
  %v94 = vld [vmem:[%s0 + $0x220] sm:$0xff]
  %v95 = vld [vmem:[%s0 + $0x228] sm:$0xff]
  %v96 = vld [vmem:[%s0 + $0x230] sm:$0xff]
  %v97 = vld [vmem:[%s0 + $0x238] sm:$0xff]
  %v98 = vld [vmem:[%s0 + $0x240] sm:$0xff]
  %v99 = vld [vmem:[%s0 + $0x248] sm:$0xff]
  %v100 = vld [vmem:[%s0 + $0x250] sm:$0xff]
  %v101 = vld [vmem:[%s0 + $0x258] sm:$0xff]
  %v102 = vld [vmem:[%s0 + $0x260] sm:$0xff]
  %v103 = vld [vmem:[%s0 + $0x268] sm:$0xff]
  %v104 = vld [vmem:[%s0 + $0x270] sm:$0xff]
  %v105 = vld [vmem:[%s0 + $0x278] sm:$0xff]
  %v106 = vld [vmem:[%s0 + $0x280] sm:$0xff]
  %v107 = vld [vmem:[%s0 + $0x288] sm:$0xff]
  %v108 = vld [vmem:[%s0 + $0x290] sm:$0xff]
  %v109 = vld [vmem:[%s0 + $0x298] sm:$0xff]
  %v110 = vld [vmem:[%s0 + $0x2a0] sm:$0xff]
  %v111 = vld [vmem:[%s0 + $0x2a8] sm:$0xff]
  %v112 = vld [vmem:[%s0 + $0x2b0] sm:$0xff]
  %v113 = vld [vmem:[%s0 + $0x2b8] sm:$0xff]
  %v114 = vld [vmem:[%s0 + $0x2c0] sm:$0xff]
  %v115 = vld [vmem:[%s0 + $0x2c8] sm:$0xff]
  %v116 = vld [vmem:[%s0 + $0x2d0] sm:$0xff]
  %v117 = vld [vmem:[%s0 + $0x2d8] sm:$0xff]
  %v118 = vld [vmem:[%s0 + $0x2e0] sm:$0xff]
  %v119 = vld [vmem:[%s0 + $0x2e8] sm:$0xff]
  %v120 = vld [vmem:[%s0 + $0x2f0] sm:$0xff]
  %v121 = vld [vmem:[%s0 + $0x2f8] sm:$0xff]
  %v122 = vld [vmem:[%s0 + $0x300] sm:$0xff]
  %v123 = vld [vmem:[%s0 + $0x308] sm:$0xff]
  %v124 = vld [vmem:[%s0 + $0x310] sm:$0xff]
  %v125 = vld [vmem:[%s0 + $0x318] sm:$0xff]
  %v126 = vld [vmem:[%s0 + $0x320] sm:$0xff]
  %v127 = vld [vmem:[%s0 + $0x328] sm:$0xff]
  %v128 = vld [vmem:[%s0 + $0x330] sm:$0xff]
  %v129 = vld [vmem:[%s0 + $0x338] sm:$0xff]
  %v130 = vld [vmem:[%s0 + $0x340] sm:$0xff]
  %v131 = vld [vmem:[%s0 + $0x348] sm:$0xff]
  %v132 = vld [vmem:[%s0 + $0x350] sm:$0xff]
  %v133 = vld [vmem:[%s0 + $0x358] sm:$0xff]
  %v134 = vld [vmem:[%s0 + $0x360] sm:$0xff]
  %v135 = vld [vmem:[%s0 + $0x368] sm:$0xff]
  %v136 = vld [vmem:[%s0 + $0x370] sm:$0xff]
  %v137 = vld [vmem:[%s0 + $0x378] sm:$0xff]
  %v138 = vld [vmem:[%s1] sm:$0xff]
  %v139 = vld [vmem:[%s1 + $0x8] sm:$0xff]
  %v140 = vld [vmem:[%s1 + $0x10] sm:$0xff]
  %v141 = vld [vmem:[%s1 + $0x18] sm:$0xff]
  %v142 = vld [vmem:[%s1 + $0x20] sm:$0xff]
  %v143 = vld [vmem:[%s1 + $0x28] sm:$0xff]
  %v144 = vld [vmem:[%s1 + $0x30] sm:$0xff]
  %v145 = vld [vmem:[%s1 + $0x38] sm:$0xff]
  %v146 = vld [vmem:[%s1 + $0x40] sm:$0xff]
  %v147 = vld [vmem:[%s1 + $0x48] sm:$0xff]
  %v148 = vld [vmem:[%s1 + $0x50] sm:$0xff]
  %v149 = vld [vmem:[%s1 + $0x58] sm:$0xff]
  %v150 = vld [vmem:[%s1 + $0x60] sm:$0xff]
  %v151 = vld [vmem:[%s1 + $0x68] sm:$0xff]
  %v152 = vld [vmem:[%s1 + $0x70] sm:$0xff]
  %v153 = vld [vmem:[%s1 + $0x78] sm:$0xff]
  %v154 = vld [vmem:[%s1 + $0x80] sm:$0xff]
  %v155 = vld [vmem:[%s1 + $0x88] sm:$0xff]
  %v156 = vld [vmem:[%s1 + $0x90] sm:$0xff]
  %v157 = vld [vmem:[%s1 + $0x98] sm:$0xff]
  %v158 = vld [vmem:[%s1 + $0xa0] sm:$0xff]
  %v159 = vld [vmem:[%s1 + $0xa8] sm:$0xff]
  %v160 = vld [vmem:[%s1 + $0xb0] sm:$0xff]
  %v161 = vld [vmem:[%s1 + $0xb8] sm:$0xff]
  %v162 = vld [vmem:[%s1 + $0xc0] sm:$0xff]
  %v163 = vld [vmem:[%s1 + $0xc8] sm:$0xff]
  %v164 = vld [vmem:[%s1 + $0xd0] sm:$0xff]
  %v165 = vld [vmem:[%s1 + $0xd8] sm:$0xff]
  %v166 = vld [vmem:[%s1 + $0xe0] sm:$0xff]
  %v167 = vld [vmem:[%s1 + $0xe8] sm:$0xff]
  %v168 = vld [vmem:[%s1 + $0xf0] sm:$0xff]
  %v169 = vld [vmem:[%s1 + $0xf8] sm:$0xff]
  %v170 = vld [vmem:[%s1 + $0x100] sm:$0xff]
  %v171 = vld [vmem:[%s1 + $0x108] sm:$0xff]
  %v172 = vld [vmem:[%s1 + $0x110] sm:$0xff]
  %v173 = vld [vmem:[%s1 + $0x118] sm:$0xff]
  %v174 = vld [vmem:[%s1 + $0x120] sm:$0xff]
  %v175 = vld [vmem:[%s1 + $0x128] sm:$0xff]
  %v176 = vld [vmem:[%s1 + $0x130] sm:$0xff]
  %v177 = vld [vmem:[%s1 + $0x138] sm:$0xff]
  %v178 = vld [vmem:[%s1 + $0x140] sm:$0xff]
  %v179 = vld [vmem:[%s1 + $0x148] sm:$0xff]
  %v180 = vld [vmem:[%s1 + $0x150] sm:$0xff]
  %v181 = vld [vmem:[%s1 + $0x158] sm:$0xff]
  %v182 = vld [vmem:[%s1 + $0x160] sm:$0xff]
  %v183 = vld [vmem:[%s1 + $0x168] sm:$0xff]
  %v184 = vld [vmem:[%s1 + $0x170] sm:$0xff]
  %v185 = vld [vmem:[%s1 + $0x178] sm:$0xff]
  %v186 = vld [vmem:[%s1 + $0x180] sm:$0xff]
  %v187 = vld [vmem:[%s1 + $0x188] sm:$0xff]
  %v188 = vld [vmem:[%s1 + $0x190] sm:$0xff]
  %v189 = vld [vmem:[%s1 + $0x198] sm:$0xff]
  %v190 = vld [vmem:[%s1 + $0x1a0] sm:$0xff]
  %v191 = vld [vmem:[%s1 + $0x1a8] sm:$0xff]
  %v192 = vld [vmem:[%s1 + $0x1b0] sm:$0xff]
  %v193 = vld [vmem:[%s1 + $0x1b8] sm:$0xff]
  %v194 = vld [vmem:[%s1 + $0x1c0] sm:$0xff]
  %v195 = vld [vmem:[%s1 + $0x1c8] sm:$0xff]
  %v196 = vld [vmem:[%s1 + $0x1d0] sm:$0xff]
  %v197 = vld [vmem:[%s1 + $0x1d8] sm:$0xff]
  %v198 = vld [vmem:[%s1 + $0x1e0] sm:$0xff]
  %v199 = vld [vmem:[%s1 + $0x1e8] sm:$0xff]
  %v200 = vld [vmem:[%s1 + $0x1f0] sm:$0xff]
  %v201 = vld [vmem:[%s1 + $0x1f8] sm:$0xff]
  %v202 = vld [vmem:[%s1 + $0x200] sm:$0xff]
  %v203 = vld [vmem:[%s1 + $0x208] sm:$0xff]
  %v204 = vld [vmem:[%s1 + $0x210] sm:$0xff]
  %v205 = vld [vmem:[%s1 + $0x218] sm:$0xff]
  %v206 = vld [vmem:[%s1 + $0x220] sm:$0xff]
  %v207 = vld [vmem:[%s1 + $0x228] sm:$0xff]
  %v208 = vld [vmem:[%s1 + $0x230] sm:$0xff]
  %v209 = vld [vmem:[%s1 + $0x238] sm:$0xff]
  %v210 = vld [vmem:[%s1 + $0x240] sm:$0xff]
  %v211 = vld [vmem:[%s1 + $0x248] sm:$0xff]
  %v212 = vld [vmem:[%s1 + $0x250] sm:$0xff]
  %v213 = vld [vmem:[%s1 + $0x258] sm:$0xff]
  %v214 = vld [vmem:[%s1 + $0x260] sm:$0xff]
  %v215 = vld [vmem:[%s1 + $0x268] sm:$0xff]
  %v216 = vld [vmem:[%s1 + $0x270] sm:$0xff]
  %v217 = vld [vmem:[%s1 + $0x278] sm:$0xff]
  %v218 = vld [vmem:[%s1 + $0x280] sm:$0xff]
  %v219 = vld [vmem:[%s1 + $0x288] sm:$0xff]
  %v220 = vld [vmem:[%s1 + $0x290] sm:$0xff]
  %v221 = vld [vmem:[%s1 + $0x298] sm:$0xff]
  %v222 = vld [vmem:[%s1 + $0x2a0] sm:$0xff]
  %v223 = vld [vmem:[%s1 + $0x2a8] sm:$0xff]
  %v224 = vld [vmem:[%s1 + $0x2b0] sm:$0xff]
  %v225 = vld [vmem:[%s1 + $0x2b8] sm:$0xff]
  %v226 = vld [vmem:[%s1 + $0x2c0] sm:$0xff]
  %v227 = vld [vmem:[%s1 + $0x2c8] sm:$0xff]
  %v228 = vld [vmem:[%s1 + $0x2d0] sm:$0xff]
  %v229 = vld [vmem:[%s1 + $0x2d8] sm:$0xff]
  %v230 = vld [vmem:[%s1 + $0x2e0] sm:$0xff]
  %v231 = vld [vmem:[%s1 + $0x2e8] sm:$0xff]
  %v232 = vld [vmem:[%s1 + $0x2f0] sm:$0xff]
  %v233 = vld [vmem:[%s1 + $0x2f8] sm:$0xff]
  %v234 = vld [vmem:[%s1 + $0x300] sm:$0xff]
  %v235 = vld [vmem:[%s1 + $0x308] sm:$0xff]
  %v236 = vld [vmem:[%s1 + $0x310] sm:$0xff]
  %v237 = vld [vmem:[%s1 + $0x318] sm:$0xff]
  %v238 = vld [vmem:[%s1 + $0x320] sm:$0xff]
  %v239 = vld [vmem:[%s1 + $0x328] sm:$0xff]
  %v240 = vld [vmem:[%s1 + $0x330] sm:$0xff]
  %v241 = vld [vmem:[%s1 + $0x338] sm:$0xff]
  %v242 = vld [vmem:[%s1 + $0x340] sm:$0xff]
  %v243 = vld [vmem:[%s1 + $0x348] sm:$0xff]
  %v244 = vld [vmem:[%s1 + $0x350] sm:$0xff]
  %v245 = vld [vmem:[%s1 + $0x358] sm:$0xff]
  %v246 = vld [vmem:[%s1 + $0x360] sm:$0xff]
  %v247 = vld [vmem:[%s1 + $0x368] sm:$0xff]
  %v248 = vld [vmem:[%s1 + $0x370] sm:$0xff]
  %v249 = vld [vmem:[%s1 + $0x378] sm:$0xff]
  %v250 = vld [vmem:[%s1 + $0x380] sm:$0xff]
  %v251 = vld [vmem:[%s1 + $0x388] sm:$0xff]
  %v252 = vld [vmem:[%s1 + $0x390] sm:$0xff]
  %v253 = vld [vmem:[%s1 + $0x398] sm:$0xff]
  %v254 = vld [vmem:[%s1 + $0x3a0] sm:$0xff]
  %v255 = vld [vmem:[%s1 + $0x3a8] sm:$0xff]
  %v256 = vld [vmem:[%s1 + $0x3b0] sm:$0xff]
  %v257 = vld [vmem:[%s1 + $0x3b8] sm:$0xff]
  %v258 = vld [vmem:[%s1 + $0x3c0] sm:$0xff]
  %v259 = vld [vmem:[%s1 + $0x3c8] sm:$0xff]
  %v260 = vld [vmem:[%s1 + $0x3d0] sm:$0xff]
  %v261 = vld [vmem:[%s1 + $0x3d8] sm:$0xff]
  %v262 = vld [vmem:[%s1 + $0x3e0] sm:$0xff]
  %v263 = vld [vmem:[%s1 + $0x3e8] sm:$0xff]
  %v264 = vld [vmem:[%s1 + $0x3f0] sm:$0xff]
  %v265 = vld [vmem:[%s1 + $0x3f8] sm:$0xff]
  %v266 = vld [vmem:[%s1 + $0x400] sm:$0xff]
  %v267 = vld [vmem:[%s1 + $0x408] sm:$0xff]
  %v268 = vld [vmem:[%s1 + $0x410] sm:$0xff]
  %v269 = vld [vmem:[%s1 + $0x418] sm:$0xff]
  %v270 = vld [vmem:[%s1 + $0x420] sm:$0xff]
  %v271 = vld [vmem:[%s1 + $0x428] sm:$0xff]
  %v272 = vld [vmem:[%s1 + $0x430] sm:$0xff]
  %v273 = vld [vmem:[%s1 + $0x438] sm:$0xff]
  %v274 = vld [vmem:[%s1 + $0x440] sm:$0xff]
  %v275 = vld [vmem:[%s1 + $0x448] sm:$0xff]
  %v276 = vld [vmem:[%s1 + $0x450] sm:$0xff]
  %v277 = vld [vmem:[%s1 + $0x458] sm:$0xff]
  %v278 = vld [vmem:[%s1 + $0x460] sm:$0xff]
  %v279 = vld [vmem:[%s1 + $0x468] sm:$0xff]
  %v280 = vld [vmem:[%s1 + $0x470] sm:$0xff]
  %v281 = vld [vmem:[%s1 + $0x478] sm:$0xff]
  %v282 = vld [vmem:[%s1 + $0x480] sm:$0xff]
  %v283 = vld [vmem:[%s1 + $0x488] sm:$0xff]
  %v284 = vld [vmem:[%s1 + $0x490] sm:$0xff]
  %v285 = vld [vmem:[%s1 + $0x498] sm:$0xff]
  %v286 = vld [vmem:[%s1 + $0x4a0] sm:$0xff]
  %v287 = vld [vmem:[%s1 + $0x4a8] sm:$0xff]
  %v288 = vld [vmem:[%s1 + $0x4b0] sm:$0xff]
  %v289 = vld [vmem:[%s1 + $0x4b8] sm:$0xff]
  %v290 = vld [vmem:[%s1 + $0x4c0] sm:$0xff]
  %v291 = vld [vmem:[%s1 + $0x4c8] sm:$0xff]
  %v292 = vld [vmem:[%s1 + $0x4d0] sm:$0xff]
  %v293 = vld [vmem:[%s1 + $0x4d8] sm:$0xff]
  %v294 = vld [vmem:[%s1 + $0x4e0] sm:$0xff]
  %v295 = vld [vmem:[%s1 + $0x4e8] sm:$0xff]
  %v296 = vld [vmem:[%s1 + $0x4f0] sm:$0xff]
  %v297 = vld [vmem:[%s1 + $0x4f8] sm:$0xff]
  %v298 = vld [vmem:[%s1 + $0x500] sm:$0xff]
  %v299 = vld [vmem:[%s1 + $0x508] sm:$0xff]
  %v300 = vld [vmem:[%s1 + $0x510] sm:$0xff]
  %v301 = vld [vmem:[%s1 + $0x518] sm:$0xff]
  %v302 = vld [vmem:[%s1 + $0x520] sm:$0xff]
  %v303 = vld [vmem:[%s1 + $0x528] sm:$0xff]
  %v304 = vld [vmem:[%s1 + $0x530] sm:$0xff]
  %v305 = vld [vmem:[%s1 + $0x538] sm:$0xff]
  %v306 = vld [vmem:[%s1 + $0x540] sm:$0xff]
  %v307 = vld [vmem:[%s1 + $0x548] sm:$0xff]
  %v308 = vld [vmem:[%s1 + $0x550] sm:$0xff]
  %v309 = vld [vmem:[%s1 + $0x558] sm:$0xff]
  %v310 = vld [vmem:[%s1 + $0x560] sm:$0xff]
  %v311 = vld [vmem:[%s1 + $0x568] sm:$0xff]
  %v312 = vld [vmem:[%s1 + $0x570] sm:$0xff]
  %v313 = vld [vmem:[%s1 + $0x578] sm:$0xff]
  %v314 = vld [vmem:[%s1 + $0x580] sm:$0xff]
  %v315 = vld [vmem:[%s1 + $0x588] sm:$0xff]
  %v316 = vld [vmem:[%s1 + $0x590] sm:$0xff]
  %v317 = vld [vmem:[%s1 + $0x598] sm:$0xff]
  %v318 = vld [vmem:[%s1 + $0x5a0] sm:$0xff]
  %v319 = vld [vmem:[%s1 + $0x5a8] sm:$0xff]
  %v320 = vld [vmem:[%s1 + $0x5b0] sm:$0xff]
  %v321 = vld [vmem:[%s1 + $0x5b8] sm:$0xff]
  %v322 = vld [vmem:[%s1 + $0x5c0] sm:$0xff]
  %v323 = vld [vmem:[%s1 + $0x5c8] sm:$0xff]
  %v324 = vld [vmem:[%s1 + $0x5d0] sm:$0xff]
  %v325 = vld [vmem:[%s1 + $0x5d8] sm:$0xff]
  %v326 = vld [vmem:[%s1 + $0x5e0] sm:$0xff]
  %v327 = vld [vmem:[%s1 + $0x5e8] sm:$0xff]
  %v328 = vld [vmem:[%s1 + $0x5f0] sm:$0xff]
  %v329 = vld [vmem:[%s1 + $0x5f8] sm:$0xff]
  %v330 = vld [vmem:[%s1 + $0x600] sm:$0xff]
  %v331 = vld [vmem:[%s1 + $0x608] sm:$0xff]
  %v332 = vld [vmem:[%s1 + $0x610] sm:$0xff]
  %v333 = vld [vmem:[%s1 + $0x618] sm:$0xff]
  %v334 = vld [vmem:[%s2] sm:$0x3]
  %v336 = vlaneseq
  %v337 = vshrl.u32 %v336, 7
  %v338 = vsub.s32 0, %v337
  %v339 = vrot.slane %v334, %v338
  %v340 = vlaneseq
  %v341 = vshrl.u32 %v340, 7
  %v342 = vsub.s32 1, %v341
  %v343 = vrot.slane %v334, %v342
  %vm346 = vcmask 130048
  %v348 = vsel %vm346, %v32, 0
  %v351 = vsel %vm346, %v39, 0
  %v354 = vsel %vm346, %v46, 0
  %v357 = vsel %vm346, %v53, 0
  %v360 = vsel %vm346, %v60, 0
  %v363 = vsel %vm346, %v67, 0
  %v366 = vsel %vm346, %v74, 0
  %v369 = vsel %vm346, %v81, 0
  %v372 = vsel %vm346, %v88, 0
  %v375 = vsel %vm346, %v95, 0
  %v378 = vsel %vm346, %v102, 0
  %v381 = vsel %vm346, %v109, 0
  %v384 = vsel %vm346, %v116, 0
  %v387 = vsel %vm346, %v123, 0
  %v390 = vsel %vm346, %v130, 0
  %v393 = vsel %vm346, %v137, 0
  %395 = vmatprep.subr.mxu0 %v169
  %396 = vmatpush1.msra.mxu0 %v168
  %397 = vmatprep.subr.mxu0 %v167
  %398 = vmatpush1.msra.mxu0 %v166
  %399 = vmatprep.subr.mxu0 %v165
  %400 = vmatpush1.msra.mxu0 %v164
  %401 = vmatprep.subr.mxu0 %v163
  %402 = vmatpush1.msra.mxu0 %v162
  %403 = vmatprep.subr.mxu0 %v161
  %404 = vmatpush1.msra.mxu0 %v160
  %405 = vmatprep.subr.mxu0 %v159
  %406 = vmatpush1.msra.mxu0 %v158
  %407 = vmatprep.subr.mxu0 %v157
  %408 = vmatpush1.msra.mxu0 %v156
  %409 = vmatprep.subr.mxu0 %v155
  %410 = vmatpush1.msra.mxu0 %v154
  %411 = vmatprep.subr.mxu0 %v153
  %412 = vmatpush1.msra.mxu0 %v152
  %413 = vmatprep.subr.mxu0 %v151
  %414 = vmatpush1.msra.mxu0 %v150
  %415 = vmatprep.subr.mxu0 %v149
  %416 = vmatpush1.msra.mxu0 %v148
  %417 = vmatprep.subr.mxu0 %v147
  %418 = vmatpush1.msra.mxu0 %v146
  %419 = vmatprep.subr.mxu0 %v145
  %420 = vmatpush1.msra.mxu0 %v144
  %421 = vmatprep.subr.mxu0 %v143
  %422 = vmatpush1.msra.mxu0 %v142
  %423 = vmatprep.subr.mxu0 %v141
  %424 = vmatpush1.msra.mxu0 %v140
  %425 = vmatprep.subr.mxu0 %v139
  %426 = vmatpush1.msra.mxu0 %v138
  %427 = vmatprep.subr.mxu0 %v201
  %428 = vmatpush2.msra.mxu0 %v200
  %429 = vmatprep.subr.mxu0 %v199
  %430 = vmatpush2.msra.mxu0 %v198
  %431 = vmatprep.subr.mxu0 %v197
  %432 = vmatpush2.msra.mxu0 %v196
  %433 = vmatprep.subr.mxu0 %v195
  %434 = vmatpush2.msra.mxu0 %v194
  %435 = vmatprep.subr.mxu0 %v193
  %436 = vmatpush2.msra.mxu0 %v192
  %437 = vmatprep.subr.mxu0 %v191
  %438 = vmatpush2.msra.mxu0 %v190
  %439 = vmatprep.subr.mxu0 %v189
  %440 = vmatpush2.msra.mxu0 %v188
  %441 = vmatprep.subr.mxu0 %v187
  %442 = vmatpush2.msra.mxu0 %v186
  %443 = vmatprep.subr.mxu0 %v185
  %444 = vmatpush2.msra.mxu0 %v184
  %445 = vmatprep.subr.mxu0 %v183
  %446 = vmatpush2.msra.mxu0 %v182
  %447 = vmatprep.subr.mxu0 %v181
  %448 = vmatpush2.msra.mxu0 %v180
  %449 = vmatprep.subr.mxu0 %v179
  %450 = vmatpush2.msra.mxu0 %v178
  %451 = vmatprep.subr.mxu0 %v177
  %452 = vmatpush2.msra.mxu0 %v176
  %453 = vmatprep.subr.mxu0 %v175
  %454 = vmatpush2.msra.mxu0 %v174
  %455 = vmatprep.subr.mxu0 %v173
  %456 = vmatpush2.msra.mxu0 %v172
  %457 = vmatprep.subr.mxu0 %v171
  %458 = vmatpush2.msra.mxu0 %v170
  %459 = vmatprep.mubr.f32.mxu0 %v27
  %460 = vmatmul.mubr.f32.gmra.mxu0 %v26
  %v461 = vpop.f32.mrf.mxu0
  %v462 = vadd.f32 %v339, %v461
  %v463 = vpop.f32.mrf.mxu0
  %v464 = vadd.f32 %v343, %v463
  %465 = vmatprep.mubr.f32.mxu0 %v34
  %466 = vmatmul.mubr.f32.gmra.mxu0 %v33
  %v467 = vpop.f32.mrf.mxu0
  %v468 = vadd.f32 %v339, %v467
  %v469 = vpop.f32.mrf.mxu0
  %v470 = vadd.f32 %v343, %v469
  %471 = vmatprep.mubr.f32.mxu0 %v41
  %472 = vmatmul.mubr.f32.gmra.mxu0 %v40
  %v473 = vpop.f32.mrf.mxu0
  %v474 = vadd.f32 %v339, %v473
  %v475 = vpop.f32.mrf.mxu0
  %v476 = vadd.f32 %v343, %v475
  %477 = vmatprep.mubr.f32.mxu0 %v48
  %478 = vmatmul.mubr.f32.gmra.mxu0 %v47
  %v479 = vpop.f32.mrf.mxu0
  %v480 = vadd.f32 %v339, %v479
  %v481 = vpop.f32.mrf.mxu0
  %v482 = vadd.f32 %v343, %v481
  %483 = vmatprep.mubr.f32.mxu0 %v55
  %484 = vmatmul.mubr.f32.gmra.mxu0 %v54
  %v485 = vpop.f32.mrf.mxu0
  %v486 = vadd.f32 %v339, %v485
  %v487 = vpop.f32.mrf.mxu0
  %v488 = vadd.f32 %v343, %v487
  %489 = vmatprep.mubr.f32.mxu0 %v62
  %490 = vmatmul.mubr.f32.gmra.mxu0 %v61
  %v491 = vpop.f32.mrf.mxu0
  %v492 = vadd.f32 %v339, %v491
  %v493 = vpop.f32.mrf.mxu0
  %v494 = vadd.f32 %v343, %v493
  %495 = vmatprep.mubr.f32.mxu0 %v69
  %496 = vmatmul.mubr.f32.gmra.mxu0 %v68
  %v497 = vpop.f32.mrf.mxu0
  %v498 = vadd.f32 %v339, %v497
  %v499 = vpop.f32.mrf.mxu0
  %v500 = vadd.f32 %v343, %v499
  %501 = vmatprep.mubr.f32.mxu0 %v76
  %502 = vmatmul.mubr.f32.gmra.mxu0 %v75
  %v503 = vpop.f32.mrf.mxu0
  %v504 = vadd.f32 %v339, %v503
  %v505 = vpop.f32.mrf.mxu0
  %v506 = vadd.f32 %v343, %v505
  %507 = vmatprep.mubr.f32.mxu0 %v83
  %508 = vmatmul.mubr.f32.gmra.mxu0 %v82
  %v509 = vpop.f32.mrf.mxu0
  %v510 = vadd.f32 %v339, %v509
  %v511 = vpop.f32.mrf.mxu0
  %v512 = vadd.f32 %v343, %v511
  %513 = vmatprep.mubr.f32.mxu0 %v90
  %514 = vmatmul.mubr.f32.gmra.mxu0 %v89
  %v515 = vpop.f32.mrf.mxu0
  %v516 = vadd.f32 %v339, %v515
  %v517 = vpop.f32.mrf.mxu0
  %v518 = vadd.f32 %v343, %v517
  %519 = vmatprep.mubr.f32.mxu0 %v97
  %520 = vmatmul.mubr.f32.gmra.mxu0 %v96
  %v521 = vpop.f32.mrf.mxu0
  %v522 = vadd.f32 %v339, %v521
  %v523 = vpop.f32.mrf.mxu0
  %v524 = vadd.f32 %v343, %v523
  %525 = vmatprep.mubr.f32.mxu0 %v104
  %526 = vmatmul.mubr.f32.gmra.mxu0 %v103
  %v527 = vpop.f32.mrf.mxu0
  %v528 = vadd.f32 %v339, %v527
  %v529 = vpop.f32.mrf.mxu0
  %v530 = vadd.f32 %v343, %v529
  %531 = vmatprep.mubr.f32.mxu0 %v111
  %532 = vmatmul.mubr.f32.gmra.mxu0 %v110
  %v533 = vpop.f32.mrf.mxu0
  %v534 = vadd.f32 %v339, %v533
  %v535 = vpop.f32.mrf.mxu0
  %v536 = vadd.f32 %v343, %v535
  %537 = vmatprep.mubr.f32.mxu0 %v118
  %538 = vmatmul.mubr.f32.gmra.mxu0 %v117
  %v539 = vpop.f32.mrf.mxu0
  %v540 = vadd.f32 %v339, %v539
  %v541 = vpop.f32.mrf.mxu0
  %v542 = vadd.f32 %v343, %v541
  %543 = vmatprep.mubr.f32.mxu0 %v125
  %544 = vmatmul.mubr.f32.gmra.mxu0 %v124
  %v545 = vpop.f32.mrf.mxu0
  %v546 = vadd.f32 %v339, %v545
  %v547 = vpop.f32.mrf.mxu0
  %v548 = vadd.f32 %v343, %v547
  %549 = vmatprep.mubr.f32.mxu0 %v132
  %550 = vmatmul.mubr.f32.gmra.mxu0 %v131
  %v551 = vpop.f32.mrf.mxu0
  %v552 = vadd.f32 %v339, %v551
  %v553 = vpop.f32.mrf.mxu0
  %v554 = vadd.f32 %v343, %v553
  %555 = vdwg.mxu0
  %556 = vmatprep.subr.mxu0 %v233
  %557 = vmatpush1.msra.mxu0 %v232
  %558 = vmatprep.subr.mxu0 %v231
  %559 = vmatpush1.msra.mxu0 %v230
  %560 = vmatprep.subr.mxu0 %v229
  %561 = vmatpush1.msra.mxu0 %v228
  %562 = vmatprep.subr.mxu0 %v227
  %563 = vmatpush1.msra.mxu0 %v226
  %564 = vmatprep.subr.mxu0 %v225
  %565 = vmatpush1.msra.mxu0 %v224
  %566 = vmatprep.subr.mxu0 %v223
  %567 = vmatpush1.msra.mxu0 %v222
  %568 = vmatprep.subr.mxu0 %v221
  %569 = vmatpush1.msra.mxu0 %v220
  %570 = vmatprep.subr.mxu0 %v219
  %571 = vmatpush1.msra.mxu0 %v218
  %572 = vmatprep.subr.mxu0 %v217
  %573 = vmatpush1.msra.mxu0 %v216
  %574 = vmatprep.subr.mxu0 %v215
  %575 = vmatpush1.msra.mxu0 %v214
  %576 = vmatprep.subr.mxu0 %v213
  %577 = vmatpush1.msra.mxu0 %v212
  %578 = vmatprep.subr.mxu0 %v211
  %579 = vmatpush1.msra.mxu0 %v210
  %580 = vmatprep.subr.mxu0 %v209
  %581 = vmatpush1.msra.mxu0 %v208
  %582 = vmatprep.subr.mxu0 %v207
  %583 = vmatpush1.msra.mxu0 %v206
  %584 = vmatprep.subr.mxu0 %v205
  %585 = vmatpush1.msra.mxu0 %v204
  %586 = vmatprep.subr.mxu0 %v203
  %587 = vmatpush1.msra.mxu0 %v202
  %588 = vmatprep.subr.mxu0 %v265
  %589 = vmatpush2.msra.mxu0 %v264
  %590 = vmatprep.subr.mxu0 %v263
  %591 = vmatpush2.msra.mxu0 %v262
  %592 = vmatprep.subr.mxu0 %v261
  %593 = vmatpush2.msra.mxu0 %v260
  %594 = vmatprep.subr.mxu0 %v259
  %595 = vmatpush2.msra.mxu0 %v258
  %596 = vmatprep.subr.mxu0 %v257
  %597 = vmatpush2.msra.mxu0 %v256
  %598 = vmatprep.subr.mxu0 %v255
  %599 = vmatpush2.msra.mxu0 %v254
  %600 = vmatprep.subr.mxu0 %v253
  %601 = vmatpush2.msra.mxu0 %v252
  %602 = vmatprep.subr.mxu0 %v251
  %603 = vmatpush2.msra.mxu0 %v250
  %604 = vmatprep.subr.mxu0 %v249
  %605 = vmatpush2.msra.mxu0 %v248
  %606 = vmatprep.subr.mxu0 %v247
  %607 = vmatpush2.msra.mxu0 %v246
  %608 = vmatprep.subr.mxu0 %v245
  %609 = vmatpush2.msra.mxu0 %v244
  %610 = vmatprep.subr.mxu0 %v243
  %611 = vmatpush2.msra.mxu0 %v242
  %612 = vmatprep.subr.mxu0 %v241
  %613 = vmatpush2.msra.mxu0 %v240
  %614 = vmatprep.subr.mxu0 %v239
  %615 = vmatpush2.msra.mxu0 %v238
  %616 = vmatprep.subr.mxu0 %v237
  %617 = vmatpush2.msra.mxu0 %v236
  %618 = vmatprep.subr.mxu0 %v235
  %619 = vmatpush2.msra.mxu0 %v234
  %620 = vmatprep.mubr.f32.mxu0 %v29
  %621 = vmatmul.mubr.f32.gmra.mxu0 %v28
  %v622 = vpop.f32.mrf.mxu0
  %v623 = vadd.f32 %v462, %v622
  %v624 = vpop.f32.mrf.mxu0
  %v625 = vadd.f32 %v464, %v624
  %626 = vmatprep.mubr.f32.mxu0 %v36
  %627 = vmatmul.mubr.f32.gmra.mxu0 %v35
  %v628 = vpop.f32.mrf.mxu0
  %v629 = vadd.f32 %v468, %v628
  %v630 = vpop.f32.mrf.mxu0
  %v631 = vadd.f32 %v470, %v630
  %632 = vmatprep.mubr.f32.mxu0 %v43
  %633 = vmatmul.mubr.f32.gmra.mxu0 %v42
  %v634 = vpop.f32.mrf.mxu0
  %v635 = vadd.f32 %v474, %v634
  %v636 = vpop.f32.mrf.mxu0
  %v637 = vadd.f32 %v476, %v636
  %638 = vmatprep.mubr.f32.mxu0 %v50
  %639 = vmatmul.mubr.f32.gmra.mxu0 %v49
  %v640 = vpop.f32.mrf.mxu0
  %v641 = vadd.f32 %v480, %v640
  %v642 = vpop.f32.mrf.mxu0
  %v643 = vadd.f32 %v482, %v642
  %644 = vmatprep.mubr.f32.mxu0 %v57
  %645 = vmatmul.mubr.f32.gmra.mxu0 %v56
  %v646 = vpop.f32.mrf.mxu0
  %v647 = vadd.f32 %v486, %v646
  %v648 = vpop.f32.mrf.mxu0
  %v649 = vadd.f32 %v488, %v648
  %650 = vmatprep.mubr.f32.mxu0 %v64
  %651 = vmatmul.mubr.f32.gmra.mxu0 %v63
  %v652 = vpop.f32.mrf.mxu0
  %v653 = vadd.f32 %v492, %v652
  %v654 = vpop.f32.mrf.mxu0
  %v655 = vadd.f32 %v494, %v654
  %656 = vmatprep.mubr.f32.mxu0 %v71
  %657 = vmatmul.mubr.f32.gmra.mxu0 %v70
  %v658 = vpop.f32.mrf.mxu0
  %v659 = vadd.f32 %v498, %v658
  %v660 = vpop.f32.mrf.mxu0
  %v661 = vadd.f32 %v500, %v660
  %662 = vmatprep.mubr.f32.mxu0 %v78
  %663 = vmatmul.mubr.f32.gmra.mxu0 %v77
  %v664 = vpop.f32.mrf.mxu0
  %v665 = vadd.f32 %v504, %v664
  %v666 = vpop.f32.mrf.mxu0
  %v667 = vadd.f32 %v506, %v666
  %668 = vmatprep.mubr.f32.mxu0 %v85
  %669 = vmatmul.mubr.f32.gmra.mxu0 %v84
  %v670 = vpop.f32.mrf.mxu0
  %v671 = vadd.f32 %v510, %v670
  %v672 = vpop.f32.mrf.mxu0
  %v673 = vadd.f32 %v512, %v672
  %674 = vmatprep.mubr.f32.mxu0 %v92
  %675 = vmatmul.mubr.f32.gmra.mxu0 %v91
  %v676 = vpop.f32.mrf.mxu0
  %v677 = vadd.f32 %v516, %v676
  %v678 = vpop.f32.mrf.mxu0
  %v679 = vadd.f32 %v518, %v678
  %680 = vmatprep.mubr.f32.mxu0 %v99
  %681 = vmatmul.mubr.f32.gmra.mxu0 %v98
  %v682 = vpop.f32.mrf.mxu0
  %v683 = vadd.f32 %v522, %v682
  %v684 = vpop.f32.mrf.mxu0
  %v685 = vadd.f32 %v524, %v684
  %686 = vmatprep.mubr.f32.mxu0 %v106
  %687 = vmatmul.mubr.f32.gmra.mxu0 %v105
  %v688 = vpop.f32.mrf.mxu0
  %v689 = vadd.f32 %v528, %v688
  %v690 = vpop.f32.mrf.mxu0
  %v691 = vadd.f32 %v530, %v690
  %692 = vmatprep.mubr.f32.mxu0 %v113
  %693 = vmatmul.mubr.f32.gmra.mxu0 %v112
  %v694 = vpop.f32.mrf.mxu0
  %v695 = vadd.f32 %v534, %v694
  %v696 = vpop.f32.mrf.mxu0
  %v697 = vadd.f32 %v536, %v696
  %698 = vmatprep.mubr.f32.mxu0 %v120
  %699 = vmatmul.mubr.f32.gmra.mxu0 %v119
  %v700 = vpop.f32.mrf.mxu0
  %v701 = vadd.f32 %v540, %v700
  %v702 = vpop.f32.mrf.mxu0
  %v703 = vadd.f32 %v542, %v702
  %704 = vmatprep.mubr.f32.mxu0 %v127
  %705 = vmatmul.mubr.f32.gmra.mxu0 %v126
  %v706 = vpop.f32.mrf.mxu0
  %v707 = vadd.f32 %v546, %v706
  %v708 = vpop.f32.mrf.mxu0
  %v709 = vadd.f32 %v548, %v708
  %710 = vmatprep.mubr.f32.mxu0 %v134
  %711 = vmatmul.mubr.f32.gmra.mxu0 %v133
  %v712 = vpop.f32.mrf.mxu0
  %v713 = vadd.f32 %v552, %v712
  %v714 = vpop.f32.mrf.mxu0
  %v715 = vadd.f32 %v554, %v714
  %716 = vdwg.mxu0
  %717 = vmatprep.subr.mxu0 %v297
  %718 = vmatpush1.msra.mxu0 %v296
  %719 = vmatprep.subr.mxu0 %v295
  %720 = vmatpush1.msra.mxu0 %v294
  %721 = vmatprep.subr.mxu0 %v293
  %722 = vmatpush1.msra.mxu0 %v292
  %723 = vmatprep.subr.mxu0 %v291
  %724 = vmatpush1.msra.mxu0 %v290
  %725 = vmatprep.subr.mxu0 %v289
  %726 = vmatpush1.msra.mxu0 %v288
  %727 = vmatprep.subr.mxu0 %v287
  %728 = vmatpush1.msra.mxu0 %v286
  %729 = vmatprep.subr.mxu0 %v285
  %730 = vmatpush1.msra.mxu0 %v284
  %731 = vmatprep.subr.mxu0 %v283
  %732 = vmatpush1.msra.mxu0 %v282
  %733 = vmatprep.subr.mxu0 %v281
  %734 = vmatpush1.msra.mxu0 %v280
  %735 = vmatprep.subr.mxu0 %v279
  %736 = vmatpush1.msra.mxu0 %v278
  %737 = vmatprep.subr.mxu0 %v277
  %738 = vmatpush1.msra.mxu0 %v276
  %739 = vmatprep.subr.mxu0 %v275
  %740 = vmatpush1.msra.mxu0 %v274
  %741 = vmatprep.subr.mxu0 %v273
  %742 = vmatpush1.msra.mxu0 %v272
  %743 = vmatprep.subr.mxu0 %v271
  %744 = vmatpush1.msra.mxu0 %v270
  %745 = vmatprep.subr.mxu0 %v269
  %746 = vmatpush1.msra.mxu0 %v268
  %747 = vmatprep.subr.mxu0 %v267
  %748 = vmatpush1.msra.mxu0 %v266
  %749 = vmatprep.subr.mxu0 %v329
  %750 = vmatpush2.msra.mxu0 %v328
  %751 = vmatprep.subr.mxu0 %v327
  %752 = vmatpush2.msra.mxu0 %v326
  %753 = vmatprep.subr.mxu0 %v325
  %754 = vmatpush2.msra.mxu0 %v324
  %755 = vmatprep.subr.mxu0 %v323
  %756 = vmatpush2.msra.mxu0 %v322
  %757 = vmatprep.subr.mxu0 %v321
  %758 = vmatpush2.msra.mxu0 %v320
  %759 = vmatprep.subr.mxu0 %v319
  %760 = vmatpush2.msra.mxu0 %v318
  %761 = vmatprep.subr.mxu0 %v317
  %762 = vmatpush2.msra.mxu0 %v316
  %763 = vmatprep.subr.mxu0 %v315
  %764 = vmatpush2.msra.mxu0 %v314
  %765 = vmatprep.subr.mxu0 %v313
  %766 = vmatpush2.msra.mxu0 %v312
  %767 = vmatprep.subr.mxu0 %v311
  %768 = vmatpush2.msra.mxu0 %v310
  %769 = vmatprep.subr.mxu0 %v309
  %770 = vmatpush2.msra.mxu0 %v308
  %771 = vmatprep.subr.mxu0 %v307
  %772 = vmatpush2.msra.mxu0 %v306
  %773 = vmatprep.subr.mxu0 %v305
  %774 = vmatpush2.msra.mxu0 %v304
  %775 = vmatprep.subr.mxu0 %v303
  %776 = vmatpush2.msra.mxu0 %v302
  %777 = vmatprep.subr.mxu0 %v301
  %778 = vmatpush2.msra.mxu0 %v300
  %779 = vmatprep.subr.mxu0 %v299
  %780 = vmatpush2.msra.mxu0 %v298
  %781 = vmatprep.mubr.f32.mxu0 %v31
  %782 = vmatmul.mubr.f32.gmra.mxu0 %v30
  %v783 = vpop.f32.mrf.mxu0
  %v784 = vadd.f32 %v623, %v783
  %v785 = vpop.f32.mrf.mxu0
  %v786 = vadd.f32 %v625, %v785
  %787 = vmatprep.mubr.f32.mxu0 %v38
  %788 = vmatmul.mubr.f32.gmra.mxu0 %v37
  %v789 = vpop.f32.mrf.mxu0
  %v790 = vadd.f32 %v629, %v789
  %v791 = vpop.f32.mrf.mxu0
  %v792 = vadd.f32 %v631, %v791
  %793 = vmatprep.mubr.f32.mxu0 %v45
  %794 = vmatmul.mubr.f32.gmra.mxu0 %v44
  %v795 = vpop.f32.mrf.mxu0
  %v796 = vadd.f32 %v635, %v795
  %v797 = vpop.f32.mrf.mxu0
  %v798 = vadd.f32 %v637, %v797
  %799 = vmatprep.mubr.f32.mxu0 %v52
  %800 = vmatmul.mubr.f32.gmra.mxu0 %v51
  %v801 = vpop.f32.mrf.mxu0
  %v802 = vadd.f32 %v641, %v801
  %v803 = vpop.f32.mrf.mxu0
  %v804 = vadd.f32 %v643, %v803
  %805 = vmatprep.mubr.f32.mxu0 %v59
  %806 = vmatmul.mubr.f32.gmra.mxu0 %v58
  %v807 = vpop.f32.mrf.mxu0
  %v808 = vadd.f32 %v647, %v807
  %v809 = vpop.f32.mrf.mxu0
  %v810 = vadd.f32 %v649, %v809
  %811 = vmatprep.mubr.f32.mxu0 %v66
  %812 = vmatmul.mubr.f32.gmra.mxu0 %v65
  %v813 = vpop.f32.mrf.mxu0
  %v814 = vadd.f32 %v653, %v813
  %v815 = vpop.f32.mrf.mxu0
  %v816 = vadd.f32 %v655, %v815
  %817 = vmatprep.mubr.f32.mxu0 %v73
  %818 = vmatmul.mubr.f32.gmra.mxu0 %v72
  %v819 = vpop.f32.mrf.mxu0
  %v820 = vadd.f32 %v659, %v819
  %v821 = vpop.f32.mrf.mxu0
  %v822 = vadd.f32 %v661, %v821
  %823 = vmatprep.mubr.f32.mxu0 %v80
  %824 = vmatmul.mubr.f32.gmra.mxu0 %v79
  %v825 = vpop.f32.mrf.mxu0
  %v826 = vadd.f32 %v665, %v825
  %v827 = vpop.f32.mrf.mxu0
  %v828 = vadd.f32 %v667, %v827
  %829 = vmatprep.mubr.f32.mxu0 %v87
  %830 = vmatmul.mubr.f32.gmra.mxu0 %v86
  %v831 = vpop.f32.mrf.mxu0
  %v832 = vadd.f32 %v671, %v831
  %v833 = vpop.f32.mrf.mxu0
  %v834 = vadd.f32 %v673, %v833
  %835 = vmatprep.mubr.f32.mxu0 %v94
  %836 = vmatmul.mubr.f32.gmra.mxu0 %v93
  %v837 = vpop.f32.mrf.mxu0
  %v838 = vadd.f32 %v677, %v837
  %v839 = vpop.f32.mrf.mxu0
  %v840 = vadd.f32 %v679, %v839
  %841 = vmatprep.mubr.f32.mxu0 %v101
  %842 = vmatmul.mubr.f32.gmra.mxu0 %v100
  %v843 = vpop.f32.mrf.mxu0
  %v844 = vadd.f32 %v683, %v843
  %v845 = vpop.f32.mrf.mxu0
  %v846 = vadd.f32 %v685, %v845
  %847 = vmatprep.mubr.f32.mxu0 %v108
  %848 = vmatmul.mubr.f32.gmra.mxu0 %v107
  %v849 = vpop.f32.mrf.mxu0
  %v850 = vadd.f32 %v689, %v849
  %v851 = vpop.f32.mrf.mxu0
  %v852 = vadd.f32 %v691, %v851
  %853 = vmatprep.mubr.f32.mxu0 %v115
  %854 = vmatmul.mubr.f32.gmra.mxu0 %v114
  %v855 = vpop.f32.mrf.mxu0
  %v856 = vadd.f32 %v695, %v855
  %v857 = vpop.f32.mrf.mxu0
  %v858 = vadd.f32 %v697, %v857
  %859 = vmatprep.mubr.f32.mxu0 %v122
  %860 = vmatmul.mubr.f32.gmra.mxu0 %v121
  %v861 = vpop.f32.mrf.mxu0
  %v862 = vadd.f32 %v701, %v861
  %v863 = vpop.f32.mrf.mxu0
  %v864 = vadd.f32 %v703, %v863
  %865 = vmatprep.mubr.f32.mxu0 %v129
  %866 = vmatmul.mubr.f32.gmra.mxu0 %v128
  %v867 = vpop.f32.mrf.mxu0
  %v868 = vadd.f32 %v707, %v867
  %v869 = vpop.f32.mrf.mxu0
  %v870 = vadd.f32 %v709, %v869
  %871 = vmatprep.mubr.f32.mxu0 %v136
  %872 = vmatmul.mubr.f32.gmra.mxu0 %v135
  %v873 = vpop.f32.mrf.mxu0
  %v874 = vadd.f32 %v713, %v873
  %v875 = vpop.f32.mrf.mxu0
  %v876 = vadd.f32 %v715, %v875
  %877 = vdwg.mxu0
  %878 = vmatprep.subr.mxu0 0.0
  %879 = vmatpush1.msra.mxu0 0.0
  %880 = vmatprep.subr.mxu0 0.0
  %881 = vmatpush1.msra.mxu0 0.0
  %882 = vmatprep.subr.mxu0 0.0
  %883 = vmatpush1.msra.mxu0 0.0
  %884 = vmatprep.subr.mxu0 0.0
  %885 = vmatpush1.msra.mxu0 0.0
  %886 = vmatprep.subr.mxu0 0.0
  %887 = vmatpush1.msra.mxu0 0.0
  %888 = vmatprep.subr.mxu0 0.0
  %889 = vmatpush1.msra.mxu0 0.0
  %890 = vmatprep.subr.mxu0 0.0
  %891 = vmatpush1.msra.mxu0 0.0
  %892 = vmatprep.subr.mxu0 0.0
  %893 = vmatpush1.msra.mxu0 0.0
  %894 = vmatprep.subr.mxu0 0.0
  %895 = vmatpush1.msra.mxu0 0.0
  %896 = vmatprep.subr.mxu0 0.0
  %897 = vmatpush1.msra.mxu0 0.0
  %898 = vmatprep.subr.mxu0 0.0
  %899 = vmatpush1.msra.mxu0 0.0
  %900 = vmatprep.subr.mxu0 0.0
  %901 = vmatpush1.msra.mxu0 0.0
  %902 = vmatprep.subr.mxu0 0.0
  %903 = vmatpush1.msra.mxu0 0.0
  %904 = vmatprep.subr.mxu0 0.0
  %905 = vmatpush1.msra.mxu0 0.0
  %906 = vmatprep.subr.mxu0 %v333
  %907 = vmatpush1.msra.mxu0 %v332
  %908 = vmatprep.subr.mxu0 %v331
  %909 = vmatpush1.msra.mxu0 %v330
  %910 = vmatprep.subr.mxu0 0.0
  %911 = vmatpush2.msra.mxu0 0.0
  %912 = vmatprep.subr.mxu0 0.0
  %913 = vmatpush2.msra.mxu0 0.0
  %914 = vmatprep.subr.mxu0 0.0
  %915 = vmatpush2.msra.mxu0 0.0
  %916 = vmatprep.subr.mxu0 0.0
  %917 = vmatpush2.msra.mxu0 0.0
  %918 = vmatprep.subr.mxu0 0.0
  %919 = vmatpush2.msra.mxu0 0.0
  %920 = vmatprep.subr.mxu0 0.0
  %921 = vmatpush2.msra.mxu0 0.0
  %922 = vmatprep.subr.mxu0 0.0
  %923 = vmatpush2.msra.mxu0 0.0
  %924 = vmatprep.subr.mxu0 0.0
  %925 = vmatpush2.msra.mxu0 0.0
  %926 = vmatprep.subr.mxu0 0.0
  %927 = vmatpush2.msra.mxu0 0.0
  %928 = vmatprep.subr.mxu0 0.0
  %929 = vmatpush2.msra.mxu0 0.0
  %930 = vmatprep.subr.mxu0 0.0
  %931 = vmatpush2.msra.mxu0 0.0
  %932 = vmatprep.subr.mxu0 0.0
  %933 = vmatpush2.msra.mxu0 0.0
  %934 = vmatprep.subr.mxu0 0.0
  %935 = vmatpush2.msra.mxu0 0.0
  %936 = vmatprep.subr.mxu0 0.0
  %937 = vmatpush2.msra.mxu0 0.0
  %938 = vmatprep.subr.mxu0 0.0
  %939 = vmatpush2.msra.mxu0 0.0
  %940 = vmatprep.subr.mxu0 0.0
  %941 = vmatpush2.msra.mxu0 0.0
  %942 = vmatprep.mubr.f32.mxu0 0.0
  %943 = vmatmul.mubr.f32.gmra.mxu0 %v348
  %v944 = vpop.f32.mrf.mxu0
  %v945 = vadd.f32 %v784, %v944
  %v946 = vpop.f32.mrf.mxu0
  %v947 = vadd.f32 %v786, %v946
  %948 = vmatprep.mubr.f32.mxu0 0.0
  %949 = vmatmul.mubr.f32.gmra.mxu0 %v351
  %v950 = vpop.f32.mrf.mxu0
  %v951 = vadd.f32 %v790, %v950
  %v952 = vpop.f32.mrf.mxu0
  %v953 = vadd.f32 %v792, %v952
  %954 = vmatprep.mubr.f32.mxu0 0.0
  %955 = vmatmul.mubr.f32.gmra.mxu0 %v354
  %v956 = vpop.f32.mrf.mxu0
  %v957 = vadd.f32 %v796, %v956
  %v958 = vpop.f32.mrf.mxu0
  %v959 = vadd.f32 %v798, %v958
  %960 = vmatprep.mubr.f32.mxu0 0.0
  %961 = vmatmul.mubr.f32.gmra.mxu0 %v357
  %v962 = vpop.f32.mrf.mxu0
  %v963 = vadd.f32 %v802, %v962
  %v964 = vpop.f32.mrf.mxu0
  %v965 = vadd.f32 %v804, %v964
  %966 = vmatprep.mubr.f32.mxu0 0.0
  %967 = vmatmul.mubr.f32.gmra.mxu0 %v360
  %v968 = vpop.f32.mrf.mxu0
  %v969 = vadd.f32 %v808, %v968
  %v970 = vpop.f32.mrf.mxu0
  %v971 = vadd.f32 %v810, %v970
  %972 = vmatprep.mubr.f32.mxu0 0.0
  %973 = vmatmul.mubr.f32.gmra.mxu0 %v363
  %v974 = vpop.f32.mrf.mxu0
  %v975 = vadd.f32 %v814, %v974
  %v976 = vpop.f32.mrf.mxu0
  %v977 = vadd.f32 %v816, %v976
  %978 = vmatprep.mubr.f32.mxu0 0.0
  %979 = vmatmul.mubr.f32.gmra.mxu0 %v366
  %v980 = vpop.f32.mrf.mxu0
  %v981 = vadd.f32 %v820, %v980
  %v982 = vpop.f32.mrf.mxu0
  %v983 = vadd.f32 %v822, %v982
  %984 = vmatprep.mubr.f32.mxu0 0.0
  %985 = vmatmul.mubr.f32.gmra.mxu0 %v369
  %v986 = vpop.f32.mrf.mxu0
  %v987 = vadd.f32 %v826, %v986
  %v988 = vpop.f32.mrf.mxu0
  %v989 = vadd.f32 %v828, %v988
  %990 = vmatprep.mubr.f32.mxu0 0.0
  %991 = vmatmul.mubr.f32.gmra.mxu0 %v372
  %v992 = vpop.f32.mrf.mxu0
  %v993 = vadd.f32 %v832, %v992
  %v994 = vpop.f32.mrf.mxu0
  %v995 = vadd.f32 %v834, %v994
  %996 = vmatprep.mubr.f32.mxu0 0.0
  %997 = vmatmul.mubr.f32.gmra.mxu0 %v375
  %v998 = vpop.f32.mrf.mxu0
  %v999 = vadd.f32 %v838, %v998
  %v1000 = vpop.f32.mrf.mxu0
  %v1001 = vadd.f32 %v840, %v1000
  %1002 = vmatprep.mubr.f32.mxu0 0.0
  %1003 = vmatmul.mubr.f32.gmra.mxu0 %v378
  %v1004 = vpop.f32.mrf.mxu0
  %v1005 = vadd.f32 %v844, %v1004
  %v1006 = vpop.f32.mrf.mxu0
  %v1007 = vadd.f32 %v846, %v1006
  %1008 = vmatprep.mubr.f32.mxu0 0.0
  %1009 = vmatmul.mubr.f32.gmra.mxu0 %v381
  %v1010 = vpop.f32.mrf.mxu0
  %v1011 = vadd.f32 %v850, %v1010
  %v1012 = vpop.f32.mrf.mxu0
  %v1013 = vadd.f32 %v852, %v1012
  %1014 = vmatprep.mubr.f32.mxu0 0.0
  %1015 = vmatmul.mubr.f32.gmra.mxu0 %v384
  %v1016 = vpop.f32.mrf.mxu0
  %v1017 = vadd.f32 %v856, %v1016
  %v1018 = vpop.f32.mrf.mxu0
  %v1019 = vadd.f32 %v858, %v1018
  %1020 = vmatprep.mubr.f32.mxu0 0.0
  %1021 = vmatmul.mubr.f32.gmra.mxu0 %v387
  %v1022 = vpop.f32.mrf.mxu0
  %v1023 = vadd.f32 %v862, %v1022
  %v1024 = vpop.f32.mrf.mxu0
  %v1025 = vadd.f32 %v864, %v1024
  %1026 = vmatprep.mubr.f32.mxu0 0.0
  %1027 = vmatmul.mubr.f32.gmra.mxu0 %v390
  %v1028 = vpop.f32.mrf.mxu0
  %v1029 = vadd.f32 %v868, %v1028
  %v1030 = vpop.f32.mrf.mxu0
  %v1031 = vadd.f32 %v870, %v1030
  %1032 = vmatprep.mubr.f32.mxu0 0.0
  %1033 = vmatmul.mubr.f32.gmra.mxu0 %v393
  %v1034 = vpop.f32.mrf.mxu0
  %v1035 = vadd.f32 %v874, %v1034
  %v1036 = vpop.f32.mrf.mxu0
  %v1037 = vadd.f32 %v876, %v1036
  %1038 = vdwg.mxu0
  %v1039 = vmul.f32 %v945, 0.01
  %v1040 = vmul.f32 %v947, 0.01
  %v1041 = vmul.f32 %v951, 0.01
  %v1042 = vmul.f32 %v953, 0.01
  %v1043 = vmul.f32 %v957, 0.01
  %v1044 = vmul.f32 %v959, 0.01
  %v1045 = vmul.f32 %v963, 0.01
  %v1046 = vmul.f32 %v965, 0.01
  %v1047 = vmul.f32 %v969, 0.01
  %v1048 = vmul.f32 %v971, 0.01
  %v1049 = vmul.f32 %v975, 0.01
  %v1050 = vmul.f32 %v977, 0.01
  %v1051 = vmul.f32 %v981, 0.01
  %v1052 = vmul.f32 %v983, 0.01
  %v1053 = vmul.f32 %v987, 0.01
  %v1054 = vmul.f32 %v989, 0.01
  %v1055 = vmul.f32 %v993, 0.01
  %v1056 = vmul.f32 %v995, 0.01
  %v1057 = vmul.f32 %v999, 0.01
  %v1058 = vmul.f32 %v1001, 0.01
  %v1059 = vmul.f32 %v1005, 0.01
  %v1060 = vmul.f32 %v1007, 0.01
  %v1061 = vmul.f32 %v1011, 0.01
  %v1062 = vmul.f32 %v1013, 0.01
  %v1063 = vmul.f32 %v1017, 0.01
  %v1064 = vmul.f32 %v1019, 0.01
  %v1065 = vmul.f32 %v1023, 0.01
  %v1066 = vmul.f32 %v1025, 0.01
  %v1067 = vmul.f32 %v1029, 0.01
  %v1068 = vmul.f32 %v1031, 0.01
  %v1069 = vmul.f32 %v1035, 0.01
  %v1070 = vmul.f32 %v1037, 0.01
  %v1071 = vmax.f32 %v945, %v1039
  %v1072 = vmax.f32 %v947, %v1040
  %v1073 = vmax.f32 %v951, %v1041
  %v1074 = vmax.f32 %v953, %v1042
  %v1075 = vmax.f32 %v957, %v1043
  %v1076 = vmax.f32 %v959, %v1044
  %v1077 = vmax.f32 %v963, %v1045
  %v1078 = vmax.f32 %v965, %v1046
  %v1079 = vmax.f32 %v969, %v1047
  %v1080 = vmax.f32 %v971, %v1048
  %v1081 = vmax.f32 %v975, %v1049
  %v1082 = vmax.f32 %v977, %v1050
  %v1083 = vmax.f32 %v981, %v1051
  %v1084 = vmax.f32 %v983, %v1052
  %v1085 = vmax.f32 %v987, %v1053
  %v1086 = vmax.f32 %v989, %v1054
  %v1087 = vmax.f32 %v993, %v1055
  %v1088 = vmax.f32 %v995, %v1056
  %v1089 = vmax.f32 %v999, %v1057
  %v1090 = vmax.f32 %v1001, %v1058
  %v1091 = vmax.f32 %v1005, %v1059
  %v1092 = vmax.f32 %v1007, %v1060
  %v1093 = vmax.f32 %v1011, %v1061
  %v1094 = vmax.f32 %v1013, %v1062
  %v1095 = vmax.f32 %v1017, %v1063
  %v1096 = vmax.f32 %v1019, %v1064
  %v1097 = vmax.f32 %v1023, %v1065
  %v1098 = vmax.f32 %v1025, %v1066
  %v1099 = vmax.f32 %v1029, %v1067
  %v1100 = vmax.f32 %v1031, %v1068
  %v1101 = vmax.f32 %v1035, %v1069
  %v1102 = vmax.f32 %v1037, %v1070
  %v1103 = vld [vmem:[%s3] sm:$0xff]
  %v1104 = vld [vmem:[%s3 + $0x8] sm:$0xff]
  %v1105 = vld [vmem:[%s3 + $0x10] sm:$0xff]
  %v1106 = vld [vmem:[%s3 + $0x18] sm:$0xff]
  %v1107 = vld [vmem:[%s3 + $0x20] sm:$0xff]
  %v1108 = vld [vmem:[%s3 + $0x28] sm:$0xff]
  %v1109 = vld [vmem:[%s3 + $0x30] sm:$0xff]
  %v1110 = vld [vmem:[%s3 + $0x38] sm:$0xff]
  %v1111 = vld [vmem:[%s3 + $0x40] sm:$0xff]
  %v1112 = vld [vmem:[%s3 + $0x48] sm:$0xff]
  %v1113 = vld [vmem:[%s3 + $0x50] sm:$0xff]
  %v1114 = vld [vmem:[%s3 + $0x58] sm:$0xff]
  %v1115 = vld [vmem:[%s3 + $0x60] sm:$0xff]
  %v1116 = vld [vmem:[%s3 + $0x68] sm:$0xff]
  %v1117 = vld [vmem:[%s3 + $0x70] sm:$0xff]
  %v1118 = vld [vmem:[%s3 + $0x78] sm:$0xff]
  %v1119 = vld [vmem:[%s3 + $0x80] sm:$0xff]
  %v1120 = vld [vmem:[%s3 + $0x88] sm:$0xff]
  %v1121 = vld [vmem:[%s3 + $0x90] sm:$0xff]
  %v1122 = vld [vmem:[%s3 + $0x98] sm:$0xff]
  %v1123 = vld [vmem:[%s3 + $0xa0] sm:$0xff]
  %v1124 = vld [vmem:[%s3 + $0xa8] sm:$0xff]
  %v1125 = vld [vmem:[%s3 + $0xb0] sm:$0xff]
  %v1126 = vld [vmem:[%s3 + $0xb8] sm:$0xff]
  %v1127 = vld [vmem:[%s3 + $0xc0] sm:$0xff]
  %v1128 = vld [vmem:[%s3 + $0xc8] sm:$0xff]
  %v1129 = vld [vmem:[%s3 + $0xd0] sm:$0xff]
  %v1130 = vld [vmem:[%s3 + $0xd8] sm:$0xff]
  %v1131 = vld [vmem:[%s3 + $0xe0] sm:$0xff]
  %v1132 = vld [vmem:[%s3 + $0xe8] sm:$0xff]
  %v1133 = vld [vmem:[%s3 + $0xf0] sm:$0xff]
  %v1134 = vld [vmem:[%s3 + $0xf8] sm:$0xff]
  %v1135 = vld [vmem:[%s3 + $0x100] sm:$0xff]
  %v1136 = vld [vmem:[%s3 + $0x108] sm:$0xff]
  %v1137 = vld [vmem:[%s3 + $0x110] sm:$0xff]
  %v1138 = vld [vmem:[%s3 + $0x118] sm:$0xff]
  %v1139 = vld [vmem:[%s3 + $0x120] sm:$0xff]
  %v1140 = vld [vmem:[%s3 + $0x128] sm:$0xff]
  %v1141 = vld [vmem:[%s3 + $0x130] sm:$0xff]
  %v1142 = vld [vmem:[%s3 + $0x138] sm:$0xff]
  %v1143 = vld [vmem:[%s3 + $0x140] sm:$0xff]
  %v1144 = vld [vmem:[%s3 + $0x148] sm:$0xff]
  %v1145 = vld [vmem:[%s3 + $0x150] sm:$0xff]
  %v1146 = vld [vmem:[%s3 + $0x158] sm:$0xff]
  %v1147 = vld [vmem:[%s3 + $0x160] sm:$0xff]
  %v1148 = vld [vmem:[%s3 + $0x168] sm:$0xff]
  %v1149 = vld [vmem:[%s3 + $0x170] sm:$0xff]
  %v1150 = vld [vmem:[%s3 + $0x178] sm:$0xff]
  %v1151 = vld [vmem:[%s3 + $0x180] sm:$0xff]
  %v1152 = vld [vmem:[%s3 + $0x188] sm:$0xff]
  %v1153 = vld [vmem:[%s3 + $0x190] sm:$0xff]
  %v1154 = vld [vmem:[%s3 + $0x198] sm:$0xff]
  %v1155 = vld [vmem:[%s3 + $0x1a0] sm:$0xff]
  %v1156 = vld [vmem:[%s3 + $0x1a8] sm:$0xff]
  %v1157 = vld [vmem:[%s3 + $0x1b0] sm:$0xff]
  %v1158 = vld [vmem:[%s3 + $0x1b8] sm:$0xff]
  %v1159 = vld [vmem:[%s3 + $0x1c0] sm:$0xff]
  %v1160 = vld [vmem:[%s3 + $0x1c8] sm:$0xff]
  %v1161 = vld [vmem:[%s3 + $0x1d0] sm:$0xff]
  %v1162 = vld [vmem:[%s3 + $0x1d8] sm:$0xff]
  %v1163 = vld [vmem:[%s3 + $0x1e0] sm:$0xff]
  %v1164 = vld [vmem:[%s3 + $0x1e8] sm:$0xff]
  %v1165 = vld [vmem:[%s3 + $0x1f0] sm:$0xff]
  %v1166 = vld [vmem:[%s3 + $0x1f8] sm:$0xff]
  %v1167 = vld [vmem:[%s4] sm:$0x3]
  %v1169 = vlaneseq
  %v1170 = vshrl.u32 %v1169, 7
  %v1171 = vsub.s32 0, %v1170
  %v1172 = vrot.slane %v1167, %v1171
  %v1173 = vlaneseq
  %v1174 = vshrl.u32 %v1173, 7
  %v1175 = vsub.s32 1, %v1174
  %v1176 = vrot.slane %v1167, %v1175
  %1179 = vmatprep.subr.mxu0 %v1134
  %1180 = vmatpush1.msra.mxu0 %v1133
  %1181 = vmatprep.subr.mxu0 %v1132
  %1182 = vmatpush1.msra.mxu0 %v1131
  %1183 = vmatprep.subr.mxu0 %v1130
  %1184 = vmatpush1.msra.mxu0 %v1129
  %1185 = vmatprep.subr.mxu0 %v1128
  %1186 = vmatpush1.msra.mxu0 %v1127
  %1187 = vmatprep.subr.mxu0 %v1126
  %1188 = vmatpush1.msra.mxu0 %v1125
  %1189 = vmatprep.subr.mxu0 %v1124
  %1190 = vmatpush1.msra.mxu0 %v1123
  %1191 = vmatprep.subr.mxu0 %v1122
  %1192 = vmatpush1.msra.mxu0 %v1121
  %1193 = vmatprep.subr.mxu0 %v1120
  %1194 = vmatpush1.msra.mxu0 %v1119
  %1195 = vmatprep.subr.mxu0 %v1118
  %1196 = vmatpush1.msra.mxu0 %v1117
  %1197 = vmatprep.subr.mxu0 %v1116
  %1198 = vmatpush1.msra.mxu0 %v1115
  %1199 = vmatprep.subr.mxu0 %v1114
  %1200 = vmatpush1.msra.mxu0 %v1113
  %1201 = vmatprep.subr.mxu0 %v1112
  %1202 = vmatpush1.msra.mxu0 %v1111
  %1203 = vmatprep.subr.mxu0 %v1110
  %1204 = vmatpush1.msra.mxu0 %v1109
  %1205 = vmatprep.subr.mxu0 %v1108
  %1206 = vmatpush1.msra.mxu0 %v1107
  %1207 = vmatprep.subr.mxu0 %v1106
  %1208 = vmatpush1.msra.mxu0 %v1105
  %1209 = vmatprep.subr.mxu0 %v1104
  %1210 = vmatpush1.msra.mxu0 %v1103
  %1211 = vmatprep.subr.mxu0 %v1166
  %1212 = vmatpush2.msra.mxu0 %v1165
  %1213 = vmatprep.subr.mxu0 %v1164
  %1214 = vmatpush2.msra.mxu0 %v1163
  %1215 = vmatprep.subr.mxu0 %v1162
  %1216 = vmatpush2.msra.mxu0 %v1161
  %1217 = vmatprep.subr.mxu0 %v1160
  %1218 = vmatpush2.msra.mxu0 %v1159
  %1219 = vmatprep.subr.mxu0 %v1158
  %1220 = vmatpush2.msra.mxu0 %v1157
  %1221 = vmatprep.subr.mxu0 %v1156
  %1222 = vmatpush2.msra.mxu0 %v1155
  %1223 = vmatprep.subr.mxu0 %v1154
  %1224 = vmatpush2.msra.mxu0 %v1153
  %1225 = vmatprep.subr.mxu0 %v1152
  %1226 = vmatpush2.msra.mxu0 %v1151
  %1227 = vmatprep.subr.mxu0 %v1150
  %1228 = vmatpush2.msra.mxu0 %v1149
  %1229 = vmatprep.subr.mxu0 %v1148
  %1230 = vmatpush2.msra.mxu0 %v1147
  %1231 = vmatprep.subr.mxu0 %v1146
  %1232 = vmatpush2.msra.mxu0 %v1145
  %1233 = vmatprep.subr.mxu0 %v1144
  %1234 = vmatpush2.msra.mxu0 %v1143
  %1235 = vmatprep.subr.mxu0 %v1142
  %1236 = vmatpush2.msra.mxu0 %v1141
  %1237 = vmatprep.subr.mxu0 %v1140
  %1238 = vmatpush2.msra.mxu0 %v1139
  %1239 = vmatprep.subr.mxu0 %v1138
  %1240 = vmatpush2.msra.mxu0 %v1137
  %1241 = vmatprep.subr.mxu0 %v1136
  %1242 = vmatpush2.msra.mxu0 %v1135
  %1243 = vmatprep.mubr.f32.mxu0 %v1072
  %1244 = vmatmul.mubr.f32.gmra.mxu0 %v1071
  %v1245 = vpop.f32.mrf.mxu0
  %v1246 = vadd.f32 %v1172, %v1245
  %v1247 = vpop.f32.mrf.mxu0
  %v1248 = vadd.f32 %v1176, %v1247
  %1249 = vmatprep.mubr.f32.mxu0 %v1074
  %1250 = vmatmul.mubr.f32.gmra.mxu0 %v1073
  %v1251 = vpop.f32.mrf.mxu0
  %v1252 = vadd.f32 %v1172, %v1251
  %v1253 = vpop.f32.mrf.mxu0
  %v1254 = vadd.f32 %v1176, %v1253
  %1255 = vmatprep.mubr.f32.mxu0 %v1076
  %1256 = vmatmul.mubr.f32.gmra.mxu0 %v1075
  %v1257 = vpop.f32.mrf.mxu0
  %v1258 = vadd.f32 %v1172, %v1257
  %v1259 = vpop.f32.mrf.mxu0
  %v1260 = vadd.f32 %v1176, %v1259
  %1261 = vmatprep.mubr.f32.mxu0 %v1078
  %1262 = vmatmul.mubr.f32.gmra.mxu0 %v1077
  %v1263 = vpop.f32.mrf.mxu0
  %v1264 = vadd.f32 %v1172, %v1263
  %v1265 = vpop.f32.mrf.mxu0
  %v1266 = vadd.f32 %v1176, %v1265
  %1267 = vmatprep.mubr.f32.mxu0 %v1080
  %1268 = vmatmul.mubr.f32.gmra.mxu0 %v1079
  %v1269 = vpop.f32.mrf.mxu0
  %v1270 = vadd.f32 %v1172, %v1269
  %v1271 = vpop.f32.mrf.mxu0
  %v1272 = vadd.f32 %v1176, %v1271
  %1273 = vmatprep.mubr.f32.mxu0 %v1082
  %1274 = vmatmul.mubr.f32.gmra.mxu0 %v1081
  %v1275 = vpop.f32.mrf.mxu0
  %v1276 = vadd.f32 %v1172, %v1275
  %v1277 = vpop.f32.mrf.mxu0
  %v1278 = vadd.f32 %v1176, %v1277
  %1279 = vmatprep.mubr.f32.mxu0 %v1084
  %1280 = vmatmul.mubr.f32.gmra.mxu0 %v1083
  %v1281 = vpop.f32.mrf.mxu0
  %v1282 = vadd.f32 %v1172, %v1281
  %v1283 = vpop.f32.mrf.mxu0
  %v1284 = vadd.f32 %v1176, %v1283
  %1285 = vmatprep.mubr.f32.mxu0 %v1086
  %1286 = vmatmul.mubr.f32.gmra.mxu0 %v1085
  %v1287 = vpop.f32.mrf.mxu0
  %v1288 = vadd.f32 %v1172, %v1287
  %v1289 = vpop.f32.mrf.mxu0
  %v1290 = vadd.f32 %v1176, %v1289
  %1291 = vmatprep.mubr.f32.mxu0 %v1088
  %1292 = vmatmul.mubr.f32.gmra.mxu0 %v1087
  %v1293 = vpop.f32.mrf.mxu0
  %v1294 = vadd.f32 %v1172, %v1293
  %v1295 = vpop.f32.mrf.mxu0
  %v1296 = vadd.f32 %v1176, %v1295
  %1297 = vmatprep.mubr.f32.mxu0 %v1090
  %1298 = vmatmul.mubr.f32.gmra.mxu0 %v1089
  %v1299 = vpop.f32.mrf.mxu0
  %v1300 = vadd.f32 %v1172, %v1299
  %v1301 = vpop.f32.mrf.mxu0
  %v1302 = vadd.f32 %v1176, %v1301
  %1303 = vmatprep.mubr.f32.mxu0 %v1092
  %1304 = vmatmul.mubr.f32.gmra.mxu0 %v1091
  %v1305 = vpop.f32.mrf.mxu0
  %v1306 = vadd.f32 %v1172, %v1305
  %v1307 = vpop.f32.mrf.mxu0
  %v1308 = vadd.f32 %v1176, %v1307
  %1309 = vmatprep.mubr.f32.mxu0 %v1094
  %1310 = vmatmul.mubr.f32.gmra.mxu0 %v1093
  %v1311 = vpop.f32.mrf.mxu0
  %v1312 = vadd.f32 %v1172, %v1311
  %v1313 = vpop.f32.mrf.mxu0
  %v1314 = vadd.f32 %v1176, %v1313
  %1315 = vmatprep.mubr.f32.mxu0 %v1096
  %1316 = vmatmul.mubr.f32.gmra.mxu0 %v1095
  %v1317 = vpop.f32.mrf.mxu0
  %v1318 = vadd.f32 %v1172, %v1317
  %v1319 = vpop.f32.mrf.mxu0
  %v1320 = vadd.f32 %v1176, %v1319
  %1321 = vmatprep.mubr.f32.mxu0 %v1098
  %1322 = vmatmul.mubr.f32.gmra.mxu0 %v1097
  %v1323 = vpop.f32.mrf.mxu0
  %v1324 = vadd.f32 %v1172, %v1323
  %v1325 = vpop.f32.mrf.mxu0
  %v1326 = vadd.f32 %v1176, %v1325
  %1327 = vmatprep.mubr.f32.mxu0 %v1100
  %1328 = vmatmul.mubr.f32.gmra.mxu0 %v1099
  %v1329 = vpop.f32.mrf.mxu0
  %v1330 = vadd.f32 %v1172, %v1329
  %v1331 = vpop.f32.mrf.mxu0
  %v1332 = vadd.f32 %v1176, %v1331
  %1333 = vmatprep.mubr.f32.mxu0 %v1102
  %1334 = vmatmul.mubr.f32.gmra.mxu0 %v1101
  %v1335 = vpop.f32.mrf.mxu0
  %v1336 = vadd.f32 %v1172, %v1335
  %v1337 = vpop.f32.mrf.mxu0
  %v1338 = vadd.f32 %v1176, %v1337
  %1339 = vdwg.mxu0
  %v1340 = vmul.f32 %v1246, 0.01
  %v1341 = vmul.f32 %v1248, 0.01
  %v1342 = vmul.f32 %v1252, 0.01
  %v1343 = vmul.f32 %v1254, 0.01
  %v1344 = vmul.f32 %v1258, 0.01
  %v1345 = vmul.f32 %v1260, 0.01
  %v1346 = vmul.f32 %v1264, 0.01
  %v1347 = vmul.f32 %v1266, 0.01
  %v1348 = vmul.f32 %v1270, 0.01
  %v1349 = vmul.f32 %v1272, 0.01
  %v1350 = vmul.f32 %v1276, 0.01
  %v1351 = vmul.f32 %v1278, 0.01
  %v1352 = vmul.f32 %v1282, 0.01
  %v1353 = vmul.f32 %v1284, 0.01
  %v1354 = vmul.f32 %v1288, 0.01
  %v1355 = vmul.f32 %v1290, 0.01
  %v1356 = vmul.f32 %v1294, 0.01
  %v1357 = vmul.f32 %v1296, 0.01
  %v1358 = vmul.f32 %v1300, 0.01
  %v1359 = vmul.f32 %v1302, 0.01
  %v1360 = vmul.f32 %v1306, 0.01
  %v1361 = vmul.f32 %v1308, 0.01
  %v1362 = vmul.f32 %v1312, 0.01
  %v1363 = vmul.f32 %v1314, 0.01
  %v1364 = vmul.f32 %v1318, 0.01
  %v1365 = vmul.f32 %v1320, 0.01
  %v1366 = vmul.f32 %v1324, 0.01
  %v1367 = vmul.f32 %v1326, 0.01
  %v1368 = vmul.f32 %v1330, 0.01
  %v1369 = vmul.f32 %v1332, 0.01
  %v1370 = vmul.f32 %v1336, 0.01
  %v1371 = vmul.f32 %v1338, 0.01
  %v1372 = vmax.f32 %v1246, %v1340
  %v1373 = vmax.f32 %v1248, %v1341
  %v1374 = vmax.f32 %v1252, %v1342
  %v1375 = vmax.f32 %v1254, %v1343
  %v1376 = vmax.f32 %v1258, %v1344
  %v1377 = vmax.f32 %v1260, %v1345
  %v1378 = vmax.f32 %v1264, %v1346
  %v1379 = vmax.f32 %v1266, %v1347
  %v1380 = vmax.f32 %v1270, %v1348
  %v1381 = vmax.f32 %v1272, %v1349
  %v1382 = vmax.f32 %v1276, %v1350
  %v1383 = vmax.f32 %v1278, %v1351
  %v1384 = vmax.f32 %v1282, %v1352
  %v1385 = vmax.f32 %v1284, %v1353
  %v1386 = vmax.f32 %v1288, %v1354
  %v1387 = vmax.f32 %v1290, %v1355
  %v1388 = vmax.f32 %v1294, %v1356
  %v1389 = vmax.f32 %v1296, %v1357
  %v1390 = vmax.f32 %v1300, %v1358
  %v1391 = vmax.f32 %v1302, %v1359
  %v1392 = vmax.f32 %v1306, %v1360
  %v1393 = vmax.f32 %v1308, %v1361
  %v1394 = vmax.f32 %v1312, %v1362
  %v1395 = vmax.f32 %v1314, %v1363
  %v1396 = vmax.f32 %v1318, %v1364
  %v1397 = vmax.f32 %v1320, %v1365
  %v1398 = vmax.f32 %v1324, %v1366
  %v1399 = vmax.f32 %v1326, %v1367
  %v1400 = vmax.f32 %v1330, %v1368
  %v1401 = vmax.f32 %v1332, %v1369
  %v1402 = vmax.f32 %v1336, %v1370
  %v1403 = vmax.f32 %v1338, %v1371
  %v1404 = vld [vmem:[%s5] sm:$0xff]
  %v1405 = vld [vmem:[%s5 + $0x8] sm:$0xff]
  %v1406 = vld [vmem:[%s5 + $0x10] sm:$0xff]
  %v1407 = vld [vmem:[%s5 + $0x18] sm:$0xff]
  %v1408 = vld [vmem:[%s5 + $0x20] sm:$0xff]
  %v1409 = vld [vmem:[%s5 + $0x28] sm:$0xff]
  %v1410 = vld [vmem:[%s5 + $0x30] sm:$0xff]
  %v1411 = vld [vmem:[%s5 + $0x38] sm:$0xff]
  %v1412 = vld [vmem:[%s5 + $0x40] sm:$0xff]
  %v1413 = vld [vmem:[%s5 + $0x48] sm:$0xff]
  %v1414 = vld [vmem:[%s5 + $0x50] sm:$0xff]
  %v1415 = vld [vmem:[%s5 + $0x58] sm:$0xff]
  %v1416 = vld [vmem:[%s5 + $0x60] sm:$0xff]
  %v1417 = vld [vmem:[%s5 + $0x68] sm:$0xff]
  %v1418 = vld [vmem:[%s5 + $0x70] sm:$0xff]
  %v1419 = vld [vmem:[%s5 + $0x78] sm:$0xff]
  %v1420 = vld [vmem:[%s5 + $0x80] sm:$0xff]
  %v1421 = vld [vmem:[%s5 + $0x88] sm:$0xff]
  %v1422 = vld [vmem:[%s5 + $0x90] sm:$0xff]
  %v1423 = vld [vmem:[%s5 + $0x98] sm:$0xff]
  %v1424 = vld [vmem:[%s5 + $0xa0] sm:$0xff]
  %v1425 = vld [vmem:[%s5 + $0xa8] sm:$0xff]
  %v1426 = vld [vmem:[%s5 + $0xb0] sm:$0xff]
  %v1427 = vld [vmem:[%s5 + $0xb8] sm:$0xff]
  %v1428 = vld [vmem:[%s5 + $0xc0] sm:$0xff]
  %v1429 = vld [vmem:[%s5 + $0xc8] sm:$0xff]
  %v1430 = vld [vmem:[%s5 + $0xd0] sm:$0xff]
  %v1431 = vld [vmem:[%s5 + $0xd8] sm:$0xff]
  %v1432 = vld [vmem:[%s5 + $0xe0] sm:$0xff]
  %v1433 = vld [vmem:[%s5 + $0xe8] sm:$0xff]
  %v1434 = vld [vmem:[%s5 + $0xf0] sm:$0xff]
  %v1435 = vld [vmem:[%s5 + $0xf8] sm:$0xff]
  %v1436 = vld [vmem:[%s6] sm:$0x1]
  %v1438 = vlaneseq
  %v1439 = vshrl.u32 %v1438, 7
  %v1440 = vsub.s32 0, %v1439
  %v1441 = vrot.slane %v1436, %v1440
  %1443 = vmatprep.subr.mxu0 0.0
  %1444 = vmatpush1.msra.mxu0 %v1419
  %1445 = vmatprep.subr.mxu0 0.0
  %1446 = vmatpush1.msra.mxu0 %v1418
  %1447 = vmatprep.subr.mxu0 0.0
  %1448 = vmatpush1.msra.mxu0 %v1417
  %1449 = vmatprep.subr.mxu0 0.0
  %1450 = vmatpush1.msra.mxu0 %v1416
  %1451 = vmatprep.subr.mxu0 0.0
  %1452 = vmatpush1.msra.mxu0 %v1415
  %1453 = vmatprep.subr.mxu0 0.0
  %1454 = vmatpush1.msra.mxu0 %v1414
  %1455 = vmatprep.subr.mxu0 0.0
  %1456 = vmatpush1.msra.mxu0 %v1413
  %1457 = vmatprep.subr.mxu0 0.0
  %1458 = vmatpush1.msra.mxu0 %v1412
  %1459 = vmatprep.subr.mxu0 0.0
  %1460 = vmatpush1.msra.mxu0 %v1411
  %1461 = vmatprep.subr.mxu0 0.0
  %1462 = vmatpush1.msra.mxu0 %v1410
  %1463 = vmatprep.subr.mxu0 0.0
  %1464 = vmatpush1.msra.mxu0 %v1409
  %1465 = vmatprep.subr.mxu0 0.0
  %1466 = vmatpush1.msra.mxu0 %v1408
  %1467 = vmatprep.subr.mxu0 0.0
  %1468 = vmatpush1.msra.mxu0 %v1407
  %1469 = vmatprep.subr.mxu0 0.0
  %1470 = vmatpush1.msra.mxu0 %v1406
  %1471 = vmatprep.subr.mxu0 0.0
  %1472 = vmatpush1.msra.mxu0 %v1405
  %1473 = vmatprep.subr.mxu0 0.0
  %1474 = vmatpush1.msra.mxu0 %v1404
  %1475 = vmatprep.subr.mxu0 0.0
  %1476 = vmatpush2.msra.mxu0 %v1435
  %1477 = vmatprep.subr.mxu0 0.0
  %1478 = vmatpush2.msra.mxu0 %v1434
  %1479 = vmatprep.subr.mxu0 0.0
  %1480 = vmatpush2.msra.mxu0 %v1433
  %1481 = vmatprep.subr.mxu0 0.0
  %1482 = vmatpush2.msra.mxu0 %v1432
  %1483 = vmatprep.subr.mxu0 0.0
  %1484 = vmatpush2.msra.mxu0 %v1431
  %1485 = vmatprep.subr.mxu0 0.0
  %1486 = vmatpush2.msra.mxu0 %v1430
  %1487 = vmatprep.subr.mxu0 0.0
  %1488 = vmatpush2.msra.mxu0 %v1429
  %1489 = vmatprep.subr.mxu0 0.0
  %1490 = vmatpush2.msra.mxu0 %v1428
  %1491 = vmatprep.subr.mxu0 0.0
  %1492 = vmatpush2.msra.mxu0 %v1427
  %1493 = vmatprep.subr.mxu0 0.0
  %1494 = vmatpush2.msra.mxu0 %v1426
  %1495 = vmatprep.subr.mxu0 0.0
  %1496 = vmatpush2.msra.mxu0 %v1425
  %1497 = vmatprep.subr.mxu0 0.0
  %1498 = vmatpush2.msra.mxu0 %v1424
  %1499 = vmatprep.subr.mxu0 0.0
  %1500 = vmatpush2.msra.mxu0 %v1423
  %1501 = vmatprep.subr.mxu0 0.0
  %1502 = vmatpush2.msra.mxu0 %v1422
  %1503 = vmatprep.subr.mxu0 0.0
  %1504 = vmatpush2.msra.mxu0 %v1421
  %1505 = vmatprep.subr.mxu0 0.0
  %1506 = vmatpush2.msra.mxu0 %v1420
  %1507 = vmatprep.mubr.f32.mxu0 %v1373
  %1508 = vmatmul.mubr.f32.gmra.mxu0 %v1372
  %v1509 = vpop.f32.mrf.mxu0
  %v1510 = vadd.f32 %v1441, %v1509
  %v1511 = vpop.f32.mrf.mxu0
  %1512 = vmatprep.mubr.f32.mxu0 %v1375
  %1513 = vmatmul.mubr.f32.gmra.mxu0 %v1374
  %v1514 = vpop.f32.mrf.mxu0
  %v1515 = vadd.f32 %v1441, %v1514
  %v1516 = vpop.f32.mrf.mxu0
  %1517 = vmatprep.mubr.f32.mxu0 %v1377
  %1518 = vmatmul.mubr.f32.gmra.mxu0 %v1376
  %v1519 = vpop.f32.mrf.mxu0
  %v1520 = vadd.f32 %v1441, %v1519
  %v1521 = vpop.f32.mrf.mxu0
  %1522 = vmatprep.mubr.f32.mxu0 %v1379
  %1523 = vmatmul.mubr.f32.gmra.mxu0 %v1378
  %v1524 = vpop.f32.mrf.mxu0
  %v1525 = vadd.f32 %v1441, %v1524
  %v1526 = vpop.f32.mrf.mxu0
  %1527 = vmatprep.mubr.f32.mxu0 %v1381
  %1528 = vmatmul.mubr.f32.gmra.mxu0 %v1380
  %v1529 = vpop.f32.mrf.mxu0
  %v1530 = vadd.f32 %v1441, %v1529
  %v1531 = vpop.f32.mrf.mxu0
  %1532 = vmatprep.mubr.f32.mxu0 %v1383
  %1533 = vmatmul.mubr.f32.gmra.mxu0 %v1382
  %v1534 = vpop.f32.mrf.mxu0
  %v1535 = vadd.f32 %v1441, %v1534
  %v1536 = vpop.f32.mrf.mxu0
  %1537 = vmatprep.mubr.f32.mxu0 %v1385
  %1538 = vmatmul.mubr.f32.gmra.mxu0 %v1384
  %v1539 = vpop.f32.mrf.mxu0
  %v1540 = vadd.f32 %v1441, %v1539
  %v1541 = vpop.f32.mrf.mxu0
  %1542 = vmatprep.mubr.f32.mxu0 %v1387
  %1543 = vmatmul.mubr.f32.gmra.mxu0 %v1386
  %v1544 = vpop.f32.mrf.mxu0
  %v1545 = vadd.f32 %v1441, %v1544
  %v1546 = vpop.f32.mrf.mxu0
  %1547 = vmatprep.mubr.f32.mxu0 %v1389
  %1548 = vmatmul.mubr.f32.gmra.mxu0 %v1388
  %v1549 = vpop.f32.mrf.mxu0
  %v1550 = vadd.f32 %v1441, %v1549
  %v1551 = vpop.f32.mrf.mxu0
  %1552 = vmatprep.mubr.f32.mxu0 %v1391
  %1553 = vmatmul.mubr.f32.gmra.mxu0 %v1390
  %v1554 = vpop.f32.mrf.mxu0
  %v1555 = vadd.f32 %v1441, %v1554
  %v1556 = vpop.f32.mrf.mxu0
  %1557 = vmatprep.mubr.f32.mxu0 %v1393
  %1558 = vmatmul.mubr.f32.gmra.mxu0 %v1392
  %v1559 = vpop.f32.mrf.mxu0
  %v1560 = vadd.f32 %v1441, %v1559
  %v1561 = vpop.f32.mrf.mxu0
  %1562 = vmatprep.mubr.f32.mxu0 %v1395
  %1563 = vmatmul.mubr.f32.gmra.mxu0 %v1394
  %v1564 = vpop.f32.mrf.mxu0
  %v1565 = vadd.f32 %v1441, %v1564
  %v1566 = vpop.f32.mrf.mxu0
  %1567 = vmatprep.mubr.f32.mxu0 %v1397
  %1568 = vmatmul.mubr.f32.gmra.mxu0 %v1396
  %v1569 = vpop.f32.mrf.mxu0
  %v1570 = vadd.f32 %v1441, %v1569
  %v1571 = vpop.f32.mrf.mxu0
  %1572 = vmatprep.mubr.f32.mxu0 %v1399
  %1573 = vmatmul.mubr.f32.gmra.mxu0 %v1398
  %v1574 = vpop.f32.mrf.mxu0
  %v1575 = vadd.f32 %v1441, %v1574
  %v1576 = vpop.f32.mrf.mxu0
  %1577 = vmatprep.mubr.f32.mxu0 %v1401
  %1578 = vmatmul.mubr.f32.gmra.mxu0 %v1400
  %v1579 = vpop.f32.mrf.mxu0
  %v1580 = vadd.f32 %v1441, %v1579
  %v1581 = vpop.f32.mrf.mxu0
  %1582 = vmatprep.mubr.f32.mxu0 %v1403
  %1583 = vmatmul.mubr.f32.gmra.mxu0 %v1402
  %v1584 = vpop.f32.mrf.mxu0
  %v1585 = vadd.f32 %v1441, %v1584
  %v1586 = vpop.f32.mrf.mxu0
  %1587 = vdwg.mxu0
  %v1588 = vmul.f32 %v1510, 0.01
  %v1589 = vmul.f32 %v1515, 0.01
  %v1590 = vmul.f32 %v1520, 0.01
  %v1591 = vmul.f32 %v1525, 0.01
  %v1592 = vmul.f32 %v1530, 0.01
  %v1593 = vmul.f32 %v1535, 0.01
  %v1594 = vmul.f32 %v1540, 0.01
  %v1595 = vmul.f32 %v1545, 0.01
  %v1596 = vmul.f32 %v1550, 0.01
  %v1597 = vmul.f32 %v1555, 0.01
  %v1598 = vmul.f32 %v1560, 0.01
  %v1599 = vmul.f32 %v1565, 0.01
  %v1600 = vmul.f32 %v1570, 0.01
  %v1601 = vmul.f32 %v1575, 0.01
  %v1602 = vmul.f32 %v1580, 0.01
  %v1603 = vmul.f32 %v1585, 0.01
  %v1604 = vmax.f32 %v1510, %v1588
  %v1605 = vmax.f32 %v1515, %v1589
  %v1606 = vmax.f32 %v1520, %v1590
  %v1607 = vmax.f32 %v1525, %v1591
  %v1608 = vmax.f32 %v1530, %v1592
  %v1609 = vmax.f32 %v1535, %v1593
  %v1610 = vmax.f32 %v1540, %v1594
  %v1611 = vmax.f32 %v1545, %v1595
  %v1612 = vmax.f32 %v1550, %v1596
  %v1613 = vmax.f32 %v1555, %v1597
  %v1614 = vmax.f32 %v1560, %v1598
  %v1615 = vmax.f32 %v1565, %v1599
  %v1616 = vmax.f32 %v1570, %v1600
  %v1617 = vmax.f32 %v1575, %v1601
  %v1618 = vmax.f32 %v1580, %v1602
  %v1619 = vmax.f32 %v1585, %v1603
  %1620 = vst [vmem:[%s7] sm:$0xff] %v1604
  %1621 = vst [vmem:[%s7 + $0x8] sm:$0xff] %v1605
  %1622 = vst [vmem:[%s7 + $0x10] sm:$0xff] %v1606
  %1623 = vst [vmem:[%s7 + $0x18] sm:$0xff] %v1607
  %1624 = vst [vmem:[%s7 + $0x20] sm:$0xff] %v1608
  %1625 = vst [vmem:[%s7 + $0x28] sm:$0xff] %v1609
  %1626 = vst [vmem:[%s7 + $0x30] sm:$0xff] %v1610
  %1627 = vst [vmem:[%s7 + $0x38] sm:$0xff] %v1611
  %1628 = vst [vmem:[%s7 + $0x40] sm:$0xff] %v1612
  %1629 = vst [vmem:[%s7 + $0x48] sm:$0xff] %v1613
  %1630 = vst [vmem:[%s7 + $0x50] sm:$0xff] %v1614
  %1631 = vst [vmem:[%s7 + $0x58] sm:$0xff] %v1615
  %1632 = vst [vmem:[%s7 + $0x60] sm:$0xff] %v1616
  %1633 = vst [vmem:[%s7 + $0x68] sm:$0xff] %v1617
  %1634 = vst [vmem:[%s7 + $0x70] sm:$0xff] %v1618
  %1635 = vst [vmem:[%s7 + $0x78] sm:$0xff] %v1619
  // Predicated region
  $region30: #{mlp_forward.1} parent=0 // pred_check
    _
  $region31: #{mlp_forward.1} parent=0 // pred_check_branch
    %1637 = sbr.rel (0) target = $region33
  $region32: #{mlp_forward.1} parent=0 // pred_region
    _
  $region33: #{mlp_forward.1} parent=0 // pred_fallthru
    _
  // Predicated region
  $region34: #{mlp_forward.1} parent=0 // pred_check
    _
  $region35: #{mlp_forward.1} parent=0 // pred_check_branch
    %1639 = sbr.rel (0) target = $region37
  $region36: #{mlp_forward.1} parent=0 // pred_region
    _
  $region37: #{mlp_forward.1} parent=0 // pred_fallthru
    _

</llo_original>
